<compile_context>
chip_gen: v5e
topology: v5e:2x2
jax: 0.10.0
libtpu: 0.0.40
codegen_flags: <defaults>
</compile_context>

<pallas_src>
import math
from functools import partial

import jax
import jax.numpy as jnp
from jax import lax
from jax.experimental import pallas as pl
from jax.experimental.pallas import tpu as pltpu


def _round_up(x, m):
    return (x + m - 1) // m * m


def _per_head_vmem_bytes(L, S_pad, E, D, in_elt, out_elt, out_attn):
    """Lane/sublane-padded VMEM footprint of one head's blocks (single buffer)."""
    def tile(r, c, elt):
        return _round_up(r, 8) * _round_up(c, 128) * elt
    b = tile(L, E, in_elt) + tile(S_pad, E, in_elt) + tile(S_pad, D, in_elt)  # q,k,v
    b += tile(L, D, out_elt)                                                  # V out
    if out_attn:
        b += 2 * tile(L, 1, 4)          # sigma in + sigma out (f32, lane-padded)
        b += 2 * tile(L, S_pad, 4)      # series + prior outputs (f32)
    return b


def _choose_block_heads(bh, per_head_bytes_db, vmem_budget=24 * 1024 * 1024):
    """Pick heads-per-grid-step: divide BH, fit VMEM, keep >=2 grid steps if possible."""
    cap = max(1, min(bh, 16, vmem_budget // max(per_head_bytes_db, 1)))
    for g in range(cap, 0, -1):
        if bh % g == 0 and bh // g >= 2:
            return g
    return 1


def _attn_body(q_ref, k_ref, v_ref, sig_ref,
               v_out_ref, series_ref, prior_ref, sigma_ref,
               *, scale, mask_flag, s_valid, out_attn):
    G, L, _ = q_ref.shape
    S_pad = k_ref.shape[1]

    # Loop-invariant masks / distance term, hoisted out of the head loop.
    row = lax.broadcasted_iota(jnp.int32, (L, S_pad), 0)
    col = lax.broadcasted_iota(jnp.int32, (L, S_pad), 1)
    masked = col >= s_valid                       # padded window columns
    if mask_flag:                                 # TriangularCausalMask (triu, k=1)
        masked = jnp.logical_or(masked, col > row)
    need_mask = mask_flag or (S_pad != s_valid)

    if out_attn:
        diff = (row - col).astype(jnp.float32)
        neg_half_d2 = -0.5 * diff * diff          # == -|i-j|^2 / 2, computed in-kernel
        inv_sqrt_2pi = jnp.float32(1.0 / math.sqrt(2.0 * math.pi))
        ln3 = jnp.float32(math.log(3.0))

        # sigma transform for all G heads at once; single unmasked full-block store.
        sig_all = sig_ref[...].astype(jnp.float32)         # (G, L, 1)
        sig_all = jax.nn.sigmoid(sig_all * 5.0) + 1e-5
        sig_all = jnp.exp(sig_all * ln3) - 1.0             # == 3**sig - 1
        sigma_ref[...] = sig_all.astype(sigma_ref.dtype)

    def body(g, carry):
        q = q_ref[g]                              # (L, E)
        k = k_ref[g]                              # (S_pad, E)
        v = v_ref[g]                              # (S_pad, D)

        # Fold the softmax scale into q: L*E multiplies instead of L*S.
        qs = (q.astype(jnp.float32) * jnp.float32(scale)).astype(q.dtype)
        scores = lax.dot_general(
            qs, k,
            dimension_numbers=(((1,), (1,)), ((), ())),
            preferred_element_type=jnp.float32)   # (L, S_pad)
        if need_mask:
            scores = jnp.where(masked, -jnp.inf, scores)

        # softmax over the window axis (dropout p=0.0 -> identity)
        m = jnp.max(scores, axis=-1, keepdims=True)
        e = jnp.exp(scores - m)
        denom = jnp.sum(e, axis=-1, keepdims=True)            # (L, 1)
        series = e * pl.reciprocal(denom, approx=False)       # exact: feeds KL loss

        # V = series @ v   (series cast to input dtype so bf16 inputs use bf16 MXU)
        V = jnp.dot(series.astype(v.dtype), v, preferred_element_type=jnp.float32)
        v_out_ref[g] = V.astype(v_out_ref.dtype)

        if out_attn:
            series_ref[g] = series.astype(series_ref.dtype)
            r = pl.reciprocal(sigma_ref[g].astype(jnp.float32),   # (L,1) recip only
                              approx=False)
            prior = (inv_sqrt_2pi * r) * jnp.exp(neg_half_d2 * (r * r))
            prior_ref[g] = prior.astype(prior_ref.dtype)
        return carry

    # Rolled loop keeps a single (L, S_pad) intermediate set live; unroll only when
    # the per-head score tile fits in ~1 vreg (gives the LLO scheduler visibility
    # without blowing the register file).
    unroll = G if (L * S_pad <= 1024 and G <= 8) else 1
    lax.fori_loop(0, G, body, 0, unroll=unroll)


def _anomaly_attn_kernel_full(q_ref, k_ref, v_ref, sig_ref,
                              v_out_ref, series_ref, prior_ref, sigma_ref,
                              *, scale, mask_flag, s_valid):
    _attn_body(q_ref, k_ref, v_ref, sig_ref,
               v_out_ref, series_ref, prior_ref, sigma_ref,
               scale=scale, mask_flag=mask_flag, s_valid=s_valid, out_attn=True)


def _anomaly_attn_kernel_v_only(q_ref, k_ref, v_ref, v_out_ref,
                                *, scale, mask_flag, s_valid):
    _attn_body(q_ref, k_ref, v_ref, None, v_out_ref, None, None, None,
               scale=scale, mask_flag=mask_flag, s_valid=s_valid, out_attn=False)


def anomaly_attention(queries, keys, values, sigma, *,
                      scale=None, mask_flag=True, output_attention=True,
                      block_heads=None):
    """Pallas implementation of AnomalyAttention.forward.

    queries: [B, L, H, E], keys: [B, S, H, E], values: [B, S, H, D], sigma: [B, L, H]
    Returns (V [B,L,H,D], series, prior, sigma_bcast) each [B,H,L,S] when
    output_attention=True, else (V, None).
    Only the default TriangularCausalMask path is supported (mask_flag).
    """
    B, L, H, E = queries.shape
    _, S, _, D = values.shape
    scale = float(scale) if scale is not None else 1.0 / math.sqrt(E)

    # TODO(synk): keep activations head-major [B*H, L, E] end-to-end upstream; these
    # transposes round-trip HBM and cost roughly as much as the kernel itself.
    q = jnp.transpose(queries, (0, 2, 1, 3)).reshape(B * H, L, E)
    k = jnp.transpose(keys, (0, 2, 1, 3)).reshape(B * H, S, E)
    v = jnp.transpose(values, (0, 2, 1, 3)).reshape(B * H, S, D)

    # Pad the window axis to a lane-dense multiple of 128; pad columns are masked
    # to -inf in-kernel (zero softmax weight) and sliced off below.
    S_pad = _round_up(S, 128)
    if S_pad != S:
        k = jnp.pad(k, ((0, 0), (0, S_pad - S), (0, 0)))
        v = jnp.pad(v, ((0, 0), (0, S_pad - S), (0, 0)))

    BH = B * H
    in_elt = jnp.dtype(q.dtype).itemsize
    out_elt = jnp.dtype(queries.dtype).itemsize
    per_head = _per_head_vmem_bytes(L, S_pad, E, D, in_elt, out_elt, output_attention)
    if block_heads is not None:
        G = block_heads
        assert BH % G == 0, "block_heads must divide B*H"
    else:
        G = _choose_block_heads(BH, 2 * per_head)      # 2x = double buffering

    cparams = pltpu.CompilerParams(
        dimension_semantics=("parallel",),
        vmem_limit_bytes=32 * 1024 * 1024)

    if output_attention:
        sig = jnp.transpose(sigma, (0, 2, 1)).reshape(BH, L, 1).astype(jnp.float32)
        kernel = partial(_anomaly_attn_kernel_full, scale=scale,
                         mask_flag=mask_flag, s_valid=S)
        grid_spec = pltpu.PrefetchScalarGridSpec(
            num_scalar_prefetch=0,
            grid=(BH // G,),
            in_specs=[
                pl.BlockSpec((G, L, E), lambda i: (i, 0, 0)),
                pl.BlockSpec((G, S_pad, E), lambda i: (i, 0, 0)),
                pl.BlockSpec((G, S_pad, D), lambda i: (i, 0, 0)),
                pl.BlockSpec((G, L, 1), lambda i: (i, 0, 0)),
            ],
            out_specs=[
                pl.BlockSpec((G, L, D), lambda i: (i, 0, 0)),
                pl.BlockSpec((G, L, S_pad), lambda i: (i, 0, 0)),
                pl.BlockSpec((G, L, S_pad), lambda i: (i, 0, 0)),
                pl.BlockSpec((G, L, 1), lambda i: (i, 0, 0)),
            ])
        out_shapes = (
            jax.ShapeDtypeStruct((BH, L, D), queries.dtype),      # V
            jax.ShapeDtypeStruct((BH, L, S_pad), jnp.float32),    # series
            jax.ShapeDtypeStruct((BH, L, S_pad), jnp.float32),    # prior
            jax.ShapeDtypeStruct((BH, L, 1), jnp.float32),        # sigma (compact)
        )
        V, series, prior, sig_c = pl.pallas_call(
            kernel, out_shape=out_shapes, grid_spec=grid_spec,
            compiler_params=cparams)(q, k, v, sig)

        V = jnp.transpose(V.reshape(B, H, L, D), (0, 2, 1, 3))    # [B, L, H, D]
        series = series[:, :, :S].reshape(B, H, L, S)
        prior = prior[:, :, :S].reshape(B, H, L, S)
        sigma_b = jnp.broadcast_to(sig_c.reshape(B, H, L, 1), (B, H, L, S))
        return V, series, prior, sigma_b

    # V-only fast path: no sigma input, no (L,S) writebacks at all.
    kernel = partial(_anomaly_attn_kernel_v_only, scale=scale,
                     mask_flag=mask_flag, s_valid=S)
    grid_spec = pltpu.PrefetchScalarGridSpec(
        num_scalar_prefetch=0,
        grid=(BH // G,),
        in_specs=[
            pl.BlockSpec((G, L, E), lambda i: (i, 0, 0)),
            pl.BlockSpec((G, S_pad, E), lambda i: (i, 0, 0)),
            pl.BlockSpec((G, S_pad, D), lambda i: (i, 0, 0)),
        ],
        out_specs=pl.BlockSpec((G, L, D), lambda i: (i, 0, 0)))
    V = pl.pallas_call(
        kernel, out_shape=jax.ShapeDtypeStruct((BH, L, D), queries.dtype),
        grid_spec=grid_spec, compiler_params=cparams)(q, k, v)
    V = jnp.transpose(V.reshape(B, H, L, D), (0, 2, 1, 3))
    return V, None


def _reference(queries, keys, values, sigma, *, scale=None, mask_flag=True):
    B, L, H, E = queries.shape
    _, S, _, D = values.shape
    scale = scale if scale is not None else 1.0 / math.sqrt(E)
    scores = jnp.einsum('blhe,bshe->bhls', queries, keys)
    if mask_flag:
        mask = jnp.triu(jnp.ones((L, S), dtype=bool), k=1)
        scores = jnp.where(mask[None, None], -jnp.inf, scores)
    attn = scale * scores
    sig = jnp.transpose(sigma, (0, 2, 1))
    sig = jax.nn.sigmoid(sig * 5.0) + 1e-5
    sig = jnp.power(3.0, sig) - 1.0
    sig = jnp.broadcast_to(sig[..., None], (B, H, L, S))
    dist = jnp.abs(jnp.arange(L)[:, None] - jnp.arange(S)[None, :]).astype(jnp.float32)
    prior = 1.0 / (math.sqrt(2 * math.pi) * sig) * jnp.exp(-dist ** 2 / 2.0 / sig ** 2)
    series = jax.nn.softmax(attn, axis=-1)
    V = jnp.einsum('bhls,bshd->blhd', series, values)
    return V, series, prior, sig


if __name__ == "__main__":
    # win_size (== L == S) = 8, batch=2, heads=4, head_dim=32
    B, L, H, E = 2, 8, 4, 32
    S, D = L, E
    key = jax.random.PRNGKey(0)
    kq, kk, kv, ks = jax.random.split(key, 4)
    queries = jax.random.normal(kq, (B, L, H, E), dtype=jnp.float32)
    keys = jax.random.normal(kk, (B, S, H, E), dtype=jnp.float32)
    values = jax.random.normal(kv, (B, S, H, D), dtype=jnp.float32)
    sigma = jax.random.normal(ks, (B, L, H), dtype=jnp.float32)

    V, series, prior, sig_b = anomaly_attention(
        queries, keys, values, sigma, output_attention=True)
    jax.block_until_ready((V, series, prior, sig_b))

    V_r, series_r, prior_r, sig_r = _reference(queries, keys, values, sigma)
    assert jnp.allclose(V, V_r, atol=1e-4, rtol=1e-4)
    assert jnp.allclose(series, series_r, atol=1e-4, rtol=1e-4)
    assert jnp.allclose(prior, prior_r, atol=1e-4, rtol=1e-4)
    assert jnp.allclose(sig_b, sig_r, atol=1e-5, rtol=1e-5)

    # V-only fast path (output_attention=False)
    V2, attn_none = anomaly_attention(
        queries, keys, values, sigma, output_attention=False)
    jax.block_until_ready(V2)
    assert attn_none is None
    assert jnp.allclose(V2, V_r, atol=1e-4, rtol=1e-4)

    print("KERNEL_OK")
</pallas_src>

<mosaic_0001>
module attributes {stable_mosaic.version = 11 : i64} {
  func.func @_anomaly_attn_kernel_full(%arg0: i32, %arg1: memref<4x8x32xf32, #tpu.memory_space<vmem>>, %arg2: memref<4x128x32xf32, #tpu.memory_space<vmem>>, %arg3: memref<4x128x32xf32, #tpu.memory_space<vmem>>, %arg4: memref<4x8x1xf32, #tpu.memory_space<vmem>>, %arg5: memref<4x8x32xf32, #tpu.memory_space<vmem>>, %arg6: memref<4x8x128xf32, #tpu.memory_space<vmem>>, %arg7: memref<4x8x128xf32, #tpu.memory_space<vmem>>, %arg8: memref<4x8x1xf32, #tpu.memory_space<vmem>>) attributes {dimension_semantics = [#tpu.dimension_semantics<parallel>], iteration_bounds = array<i64: 2>, scalar_prefetch = 0 : i64, scratch_operands = 0 : i64, tpu.core_type = #tpu.core_type<tc>, window_params = [{transform_indices = @transform_0, window_bounds = array<i64: 4, 8, 32>}, {transform_indices = @transform_1, window_bounds = array<i64: 4, 128, 32>}, {transform_indices = @transform_2, window_bounds = array<i64: 4, 128, 32>}, {transform_indices = @transform_3, window_bounds = array<i64: 4, 8, 1>}, {transform_indices = @transform_4, window_bounds = array<i64: 4, 8, 32>}, {transform_indices = @transform_5, window_bounds = array<i64: 4, 8, 128>}, {transform_indices = @transform_6, window_bounds = array<i64: 4, 8, 128>}, {transform_indices = @transform_7, window_bounds = array<i64: 4, 8, 1>}]} {
    %0 = tpu.iota {dimensions = array<i32: 0>} : vector<8x128xi32>
    %1 = tpu.iota {dimensions = array<i32: 1>} : vector<8x128xi32>
    %c8_i32 = arith.constant 8 : i32
    %2 = vector.broadcast %c8_i32 : i32 to vector<8x128xi32>
    %3 = arith.cmpi sge, %1, %2 : vector<8x128xi32>
    %4 = arith.cmpi sgt, %1, %0 : vector<8x128xi32>
    %5 = arith.ori %3, %4 : vector<8x128xi1>
    %6 = arith.subi %0, %1 : vector<8x128xi32>
    %7 = arith.sitofp %6 : vector<8x128xi32> to vector<8x128xf32>
    %cst = arith.constant -5.000000e-01 : f32
    %8 = vector.broadcast %cst : f32 to vector<8x128xf32>
    %9 = arith.mulf %8, %7 : vector<8x128xf32>
    %10 = arith.mulf %9, %7 : vector<8x128xf32>
    %c0 = arith.constant 0 : index
    %c0_0 = arith.constant 0 : index
    %c0_1 = arith.constant 0 : index
    %11 = vector.load %arg4[%c0, %c0_0, %c0_1] : memref<4x8x1xf32, #tpu.memory_space<vmem>>, vector<4x8x1xf32>
    %cst_2 = arith.constant 5.000000e+00 : f32
    %12 = vector.broadcast %cst_2 : f32 to vector<4x8x1xf32>
    %13 = arith.mulf %11, %12 : vector<4x8x1xf32>
    %14 = arith.negf %13 : vector<4x8x1xf32>
    %15 = math.exp %14 : vector<4x8x1xf32>
    %cst_3 = arith.constant 1.000000e+00 : f32
    %16 = vector.broadcast %cst_3 : f32 to vector<4x8x1xf32>
    %17 = arith.addf %16, %15 : vector<4x8x1xf32>
    %18 = arith.divf %16, %17 : vector<4x8x1xf32>
    %cst_4 = arith.constant 9.99999974E-6 : f32
    %19 = vector.broadcast %cst_4 : f32 to vector<4x8x1xf32>
    %20 = arith.addf %18, %19 : vector<4x8x1xf32>
    %cst_5 = arith.constant 1.09861231 : f32
    %21 = vector.broadcast %cst_5 : f32 to vector<4x8x1xf32>
    %22 = arith.mulf %20, %21 : vector<4x8x1xf32>
    %23 = math.exp %22 : vector<4x8x1xf32>
    %cst_6 = arith.constant 1.000000e+00 : f32
    %24 = vector.broadcast %cst_6 : f32 to vector<4x8x1xf32>
    %25 = arith.subf %23, %24 : vector<4x8x1xf32>
    %c0_7 = arith.constant 0 : index
    %c0_8 = arith.constant 0 : index
    %c0_9 = arith.constant 0 : index
    %26 = vector.load %arg8[%c0_7, %c0_8, %c0_9] : memref<4x8x1xf32, #tpu.memory_space<vmem>>, vector<4x8x1xf32>
    tpu.vector_store %arg8[%c0_7, %c0_8, %c0_9], %25 {strides = array<i32>} : memref<4x8x1xf32, #tpu.memory_space<vmem>>, vector<4x8x1xf32>,
    %cst_10 = arith.constant 0.398942292 : f32
    %c0_i32 = arith.constant 0 : i32
    %27 = arith.index_cast %c0_i32 : i32 to index
    %c0_11 = arith.constant 0 : index
    %c0_12 = arith.constant 0 : index
    %28 = vector.load %arg1[%27, %c0_11, %c0_12] : memref<4x8x32xf32, #tpu.memory_space<vmem>>, vector<1x8x32xf32>
    %29 = vector.shape_cast %28 : vector<1x8x32xf32> to vector<8x32xf32>
    %30 = arith.index_cast %c0_i32 : i32 to index
    %c0_13 = arith.constant 0 : index
    %c0_14 = arith.constant 0 : index
    %31 = vector.load %arg2[%30, %c0_13, %c0_14] : memref<4x128x32xf32, #tpu.memory_space<vmem>>, vector<1x128x32xf32>
    %32 = vector.shape_cast %31 : vector<1x128x32xf32> to vector<128x32xf32>
    %33 = arith.index_cast %c0_i32 : i32 to index
    %c0_15 = arith.constant 0 : index
    %c0_16 = arith.constant 0 : index
    %34 = vector.load %arg3[%33, %c0_15, %c0_16] : memref<4x128x32xf32, #tpu.memory_space<vmem>>, vector<1x128x32xf32>
    %35 = vector.shape_cast %34 : vector<1x128x32xf32> to vector<128x32xf32>
    %cst_17 = arith.constant 0.176776692 : f32
    %36 = vector.broadcast %cst_17 : f32 to vector<8x32xf32>
    %37 = arith.mulf %29, %36 : vector<8x32xf32>
    %cst_18 = arith.constant dense<0.000000e+00> : vector<8x128xf32>
    %38 = tpu.matmul %37, %32, %cst_18 {dimension_numbers = #tpu.dot_dimension_numbers<[1], [1], [0], [0], [0, 0, 1, 0], [], []>} : vector<8x32xf32>, vector<128x32xf32>, vector<8x128xf32> -> vector<8x128xf32>
    %cst_19 = arith.constant 0xFF800000 : f32
    %39 = vector.broadcast %cst_19 : f32 to vector<8x128xf32>
    %40 = arith.select %5, %39, %38 : vector<8x128xi1>, vector<8x128xf32>
    %cst_20 = arith.constant dense<0xFF800000> : vector<8xf32>
    %41 = vector.multi_reduction <maximumf>, %40, %cst_20 [1] : vector<8x128xf32> to vector<8xf32>
    %42 = vector.shape_cast %41 : vector<8xf32> to vector<8x1xf32>
    %43 = vector.broadcast %42 : vector<8x1xf32> to vector<8x128xf32>
    %44 = arith.subf %40, %43 : vector<8x128xf32>
    %45 = math.exp %44 : vector<8x128xf32>
    %cst_21 = arith.constant dense<0.000000e+00> : vector<8xf32>
    %46 = vector.multi_reduction <add>, %45, %cst_21 [1] : vector<8x128xf32> to vector<8xf32>
    %47 = vector.shape_cast %46 : vector<8xf32> to vector<8x1xf32>
    %48 = tpu.reciprocal %47 : vector<8x1xf32> -> vector<8x1xf32>
    %49 = vector.broadcast %48 : vector<8x1xf32> to vector<8x128xf32>
    %50 = arith.mulf %45, %49 : vector<8x128xf32>
    %cst_22 = arith.constant dense<0.000000e+00> : vector<8x32xf32>
    %51 = tpu.matmul %50, %35, %cst_22 {dimension_numbers = #tpu.dot_dimension_numbers<[1], [0], [0], [1], [0, 0, 1, 1], [], []>} : vector<8x128xf32>, vector<128x32xf32>, vector<8x32xf32> -> vector<8x32xf32>
    %52 = arith.index_cast %c0_i32 : i32 to index
    %c0_23 = arith.constant 0 : index
    %c0_24 = arith.constant 0 : index
    %53 = vector.load %arg5[%52, %c0_23, %c0_24] : memref<4x8x32xf32, #tpu.memory_space<vmem>>, vector<1x8x32xf32>
    %54 = vector.shape_cast %53 : vector<1x8x32xf32> to vector<8x32xf32>
    %55 = vector.shape_cast %51 : vector<8x32xf32> to vector<1x8x32xf32>
    tpu.vector_store %arg5[%52, %c0_23, %c0_24], %55 {strides = array<i32>} : memref<4x8x32xf32, #tpu.memory_space<vmem>>, vector<1x8x32xf32>,
    %56 = arith.index_cast %c0_i32 : i32 to index
    %c0_25 = arith.constant 0 : index
    %c0_26 = arith.constant 0 : index
    %57 = vector.load %arg6[%56, %c0_25, %c0_26] : memref<4x8x128xf32, #tpu.memory_space<vmem>>, vector<1x8x128xf32>
    %58 = vector.shape_cast %57 : vector<1x8x128xf32> to vector<8x128xf32>
    %59 = vector.shape_cast %50 : vector<8x128xf32> to vector<1x8x128xf32>
    tpu.vector_store %arg6[%56, %c0_25, %c0_26], %59 {strides = array<i32>} : memref<4x8x128xf32, #tpu.memory_space<vmem>>, vector<1x8x128xf32>,
    %60 = arith.index_cast %c0_i32 : i32 to index
    %c0_27 = arith.constant 0 : index
    %c0_28 = arith.constant 0 : index
    %61 = vector.load %arg8[%60, %c0_27, %c0_28] : memref<4x8x1xf32, #tpu.memory_space<vmem>>, vector<1x8x1xf32>
    %62 = vector.shape_cast %61 : vector<1x8x1xf32> to vector<8x1xf32>
    %63 = tpu.reciprocal %62 : vector<8x1xf32> -> vector<8x1xf32>
    %64 = vector.broadcast %cst_10 : f32 to vector<8x1xf32>
    %65 = arith.mulf %64, %63 : vector<8x1xf32>
    %66 = arith.mulf %63, %63 : vector<8x1xf32>
    %67 = vector.broadcast %66 : vector<8x1xf32> to vector<8x128xf32>
    %68 = arith.mulf %10, %67 : vector<8x128xf32>
    %69 = math.exp %68 : vector<8x128xf32>
    %70 = vector.broadcast %65 : vector<8x1xf32> to vector<8x128xf32>
    %71 = arith.mulf %70, %69 : vector<8x128xf32>
    %72 = arith.index_cast %c0_i32 : i32 to index
    %c0_29 = arith.constant 0 : index
    %c0_30 = arith.constant 0 : index
    %73 = vector.load %arg7[%72, %c0_29, %c0_30] : memref<4x8x128xf32, #tpu.memory_space<vmem>>, vector<1x8x128xf32>
    %74 = vector.shape_cast %73 : vector<1x8x128xf32> to vector<8x128xf32>
    %75 = vector.shape_cast %71 : vector<8x128xf32> to vector<1x8x128xf32>
    tpu.vector_store %arg7[%72, %c0_29, %c0_30], %75 {strides = array<i32>} : memref<4x8x128xf32, #tpu.memory_space<vmem>>, vector<1x8x128xf32>,
    %c1_i32 = arith.constant 1 : i32
    %76 = arith.index_cast %c1_i32 : i32 to index
    %c0_31 = arith.constant 0 : index
    %c0_32 = arith.constant 0 : index
    %77 = vector.load %arg1[%76, %c0_31, %c0_32] : memref<4x8x32xf32, #tpu.memory_space<vmem>>, vector<1x8x32xf32>
    %78 = vector.shape_cast %77 : vector<1x8x32xf32> to vector<8x32xf32>
    %79 = arith.index_cast %c1_i32 : i32 to index
    %c0_33 = arith.constant 0 : index
    %c0_34 = arith.constant 0 : index
    %80 = vector.load %arg2[%79, %c0_33, %c0_34] : memref<4x128x32xf32, #tpu.memory_space<vmem>>, vector<1x128x32xf32>
    %81 = vector.shape_cast %80 : vector<1x128x32xf32> to vector<128x32xf32>
    %82 = arith.index_cast %c1_i32 : i32 to index
    %c0_35 = arith.constant 0 : index
    %c0_36 = arith.constant 0 : index
    %83 = vector.load %arg3[%82, %c0_35, %c0_36] : memref<4x128x32xf32, #tpu.memory_space<vmem>>, vector<1x128x32xf32>
    %84 = vector.shape_cast %83 : vector<1x128x32xf32> to vector<128x32xf32>
    %cst_37 = arith.constant 0.176776692 : f32
    %85 = vector.broadcast %cst_37 : f32 to vector<8x32xf32>
    %86 = arith.mulf %78, %85 : vector<8x32xf32>
    %cst_38 = arith.constant dense<0.000000e+00> : vector<8x128xf32>
    %87 = tpu.matmul %86, %81, %cst_38 {dimension_numbers = #tpu.dot_dimension_numbers<[1], [1], [0], [0], [0, 0, 1, 0], [], []>} : vector<8x32xf32>, vector<128x32xf32>, vector<8x128xf32> -> vector<8x128xf32>
    %cst_39 = arith.constant 0xFF800000 : f32
    %88 = vector.broadcast %cst_39 : f32 to vector<8x128xf32>
    %89 = arith.select %5, %88, %87 : vector<8x128xi1>, vector<8x128xf32>
    %cst_40 = arith.constant dense<0xFF800000> : vector<8xf32>
    %90 = vector.multi_reduction <maximumf>, %89, %cst_40 [1] : vector<8x128xf32> to vector<8xf32>
    %91 = vector.shape_cast %90 : vector<8xf32> to vector<8x1xf32>
    %92 = vector.broadcast %91 : vector<8x1xf32> to vector<8x128xf32>
    %93 = arith.subf %89, %92 : vector<8x128xf32>
    %94 = math.exp %93 : vector<8x128xf32>
    %cst_41 = arith.constant dense<0.000000e+00> : vector<8xf32>
    %95 = vector.multi_reduction <add>, %94, %cst_41 [1] : vector<8x128xf32> to vector<8xf32>
    %96 = vector.shape_cast %95 : vector<8xf32> to vector<8x1xf32>
    %97 = tpu.reciprocal %96 : vector<8x1xf32> -> vector<8x1xf32>
    %98 = vector.broadcast %97 : vector<8x1xf32> to vector<8x128xf32>
    %99 = arith.mulf %94, %98 : vector<8x128xf32>
    %cst_42 = arith.constant dense<0.000000e+00> : vector<8x32xf32>
    %100 = tpu.matmul %99, %84, %cst_42 {dimension_numbers = #tpu.dot_dimension_numbers<[1], [0], [0], [1], [0, 0, 1, 1], [], []>} : vector<8x128xf32>, vector<128x32xf32>, vector<8x32xf32> -> vector<8x32xf32>
    %101 = arith.index_cast %c1_i32 : i32 to index
    %c0_43 = arith.constant 0 : index
    %c0_44 = arith.constant 0 : index
    %102 = vector.load %arg5[%101, %c0_43, %c0_44] : memref<4x8x32xf32, #tpu.memory_space<vmem>>, vector<1x8x32xf32>
    %103 = vector.shape_cast %102 : vector<1x8x32xf32> to vector<8x32xf32>
    %104 = vector.shape_cast %100 : vector<8x32xf32> to vector<1x8x32xf32>
    tpu.vector_store %arg5[%101, %c0_43, %c0_44], %104 {strides = array<i32>} : memref<4x8x32xf32, #tpu.memory_space<vmem>>, vector<1x8x32xf32>,
    %105 = arith.index_cast %c1_i32 : i32 to index
    %c0_45 = arith.constant 0 : index
    %c0_46 = arith.constant 0 : index
    %106 = vector.load %arg6[%105, %c0_45, %c0_46] : memref<4x8x128xf32, #tpu.memory_space<vmem>>, vector<1x8x128xf32>
    %107 = vector.shape_cast %106 : vector<1x8x128xf32> to vector<8x128xf32>
    %108 = vector.shape_cast %99 : vector<8x128xf32> to vector<1x8x128xf32>
    tpu.vector_store %arg6[%105, %c0_45, %c0_46], %108 {strides = array<i32>} : memref<4x8x128xf32, #tpu.memory_space<vmem>>, vector<1x8x128xf32>,
    %109 = arith.index_cast %c1_i32 : i32 to index
    %c0_47 = arith.constant 0 : index
    %c0_48 = arith.constant 0 : index
    %110 = vector.load %arg8[%109, %c0_47, %c0_48] : memref<4x8x1xf32, #tpu.memory_space<vmem>>, vector<1x8x1xf32>
    %111 = vector.shape_cast %110 : vector<1x8x1xf32> to vector<8x1xf32>
    %112 = tpu.reciprocal %111 : vector<8x1xf32> -> vector<8x1xf32>
    %113 = vector.broadcast %cst_10 : f32 to vector<8x1xf32>
    %114 = arith.mulf %113, %112 : vector<8x1xf32>
    %115 = arith.mulf %112, %112 : vector<8x1xf32>
    %116 = vector.broadcast %115 : vector<8x1xf32> to vector<8x128xf32>
    %117 = arith.mulf %10, %116 : vector<8x128xf32>
    %118 = math.exp %117 : vector<8x128xf32>
    %119 = vector.broadcast %114 : vector<8x1xf32> to vector<8x128xf32>
    %120 = arith.mulf %119, %118 : vector<8x128xf32>
    %121 = arith.index_cast %c1_i32 : i32 to index
    %c0_49 = arith.constant 0 : index
    %c0_50 = arith.constant 0 : index
    %122 = vector.load %arg7[%121, %c0_49, %c0_50] : memref<4x8x128xf32, #tpu.memory_space<vmem>>, vector<1x8x128xf32>
    %123 = vector.shape_cast %122 : vector<1x8x128xf32> to vector<8x128xf32>
    %124 = vector.shape_cast %120 : vector<8x128xf32> to vector<1x8x128xf32>
    tpu.vector_store %arg7[%121, %c0_49, %c0_50], %124 {strides = array<i32>} : memref<4x8x128xf32, #tpu.memory_space<vmem>>, vector<1x8x128xf32>,
    %c2_i32 = arith.constant 2 : i32
    %125 = arith.index_cast %c2_i32 : i32 to index
    %c0_51 = arith.constant 0 : index
    %c0_52 = arith.constant 0 : index
    %126 = vector.load %arg1[%125, %c0_51, %c0_52] : memref<4x8x32xf32, #tpu.memory_space<vmem>>, vector<1x8x32xf32>
    %127 = vector.shape_cast %126 : vector<1x8x32xf32> to vector<8x32xf32>
    %128 = arith.index_cast %c2_i32 : i32 to index
    %c0_53 = arith.constant 0 : index
    %c0_54 = arith.constant 0 : index
    %129 = vector.load %arg2[%128, %c0_53, %c0_54] : memref<4x128x32xf32, #tpu.memory_space<vmem>>, vector<1x128x32xf32>
    %130 = vector.shape_cast %129 : vector<1x128x32xf32> to vector<128x32xf32>
    %131 = arith.index_cast %c2_i32 : i32 to index
    %c0_55 = arith.constant 0 : index
    %c0_56 = arith.constant 0 : index
    %132 = vector.load %arg3[%131, %c0_55, %c0_56] : memref<4x128x32xf32, #tpu.memory_space<vmem>>, vector<1x128x32xf32>
    %133 = vector.shape_cast %132 : vector<1x128x32xf32> to vector<128x32xf32>
    %cst_57 = arith.constant 0.176776692 : f32
    %134 = vector.broadcast %cst_57 : f32 to vector<8x32xf32>
    %135 = arith.mulf %127, %134 : vector<8x32xf32>
    %cst_58 = arith.constant dense<0.000000e+00> : vector<8x128xf32>
    %136 = tpu.matmul %135, %130, %cst_58 {dimension_numbers = #tpu.dot_dimension_numbers<[1], [1], [0], [0], [0, 0, 1, 0], [], []>} : vector<8x32xf32>, vector<128x32xf32>, vector<8x128xf32> -> vector<8x128xf32>
    %cst_59 = arith.constant 0xFF800000 : f32
    %137 = vector.broadcast %cst_59 : f32 to vector<8x128xf32>
    %138 = arith.select %5, %137, %136 : vector<8x128xi1>, vector<8x128xf32>
    %cst_60 = arith.constant dense<0xFF800000> : vector<8xf32>
    %139 = vector.multi_reduction <maximumf>, %138, %cst_60 [1] : vector<8x128xf32> to vector<8xf32>
    %140 = vector.shape_cast %139 : vector<8xf32> to vector<8x1xf32>
    %141 = vector.broadcast %140 : vector<8x1xf32> to vector<8x128xf32>
    %142 = arith.subf %138, %141 : vector<8x128xf32>
    %143 = math.exp %142 : vector<8x128xf32>
    %cst_61 = arith.constant dense<0.000000e+00> : vector<8xf32>
    %144 = vector.multi_reduction <add>, %143, %cst_61 [1] : vector<8x128xf32> to vector<8xf32>
    %145 = vector.shape_cast %144 : vector<8xf32> to vector<8x1xf32>
    %146 = tpu.reciprocal %145 : vector<8x1xf32> -> vector<8x1xf32>
    %147 = vector.broadcast %146 : vector<8x1xf32> to vector<8x128xf32>
    %148 = arith.mulf %143, %147 : vector<8x128xf32>
    %cst_62 = arith.constant dense<0.000000e+00> : vector<8x32xf32>
    %149 = tpu.matmul %148, %133, %cst_62 {dimension_numbers = #tpu.dot_dimension_numbers<[1], [0], [0], [1], [0, 0, 1, 1], [], []>} : vector<8x128xf32>, vector<128x32xf32>, vector<8x32xf32> -> vector<8x32xf32>
    %150 = arith.index_cast %c2_i32 : i32 to index
    %c0_63 = arith.constant 0 : index
    %c0_64 = arith.constant 0 : index
    %151 = vector.load %arg5[%150, %c0_63, %c0_64] : memref<4x8x32xf32, #tpu.memory_space<vmem>>, vector<1x8x32xf32>
    %152 = vector.shape_cast %151 : vector<1x8x32xf32> to vector<8x32xf32>
    %153 = vector.shape_cast %149 : vector<8x32xf32> to vector<1x8x32xf32>
    tpu.vector_store %arg5[%150, %c0_63, %c0_64], %153 {strides = array<i32>} : memref<4x8x32xf32, #tpu.memory_space<vmem>>, vector<1x8x32xf32>,
    %154 = arith.index_cast %c2_i32 : i32 to index
    %c0_65 = arith.constant 0 : index
    %c0_66 = arith.constant 0 : index
    %155 = vector.load %arg6[%154, %c0_65, %c0_66] : memref<4x8x128xf32, #tpu.memory_space<vmem>>, vector<1x8x128xf32>
    %156 = vector.shape_cast %155 : vector<1x8x128xf32> to vector<8x128xf32>
    %157 = vector.shape_cast %148 : vector<8x128xf32> to vector<1x8x128xf32>
    tpu.vector_store %arg6[%154, %c0_65, %c0_66], %157 {strides = array<i32>} : memref<4x8x128xf32, #tpu.memory_space<vmem>>, vector<1x8x128xf32>,
    %158 = arith.index_cast %c2_i32 : i32 to index
    %c0_67 = arith.constant 0 : index
    %c0_68 = arith.constant 0 : index
    %159 = vector.load %arg8[%158, %c0_67, %c0_68] : memref<4x8x1xf32, #tpu.memory_space<vmem>>, vector<1x8x1xf32>
    %160 = vector.shape_cast %159 : vector<1x8x1xf32> to vector<8x1xf32>
    %161 = tpu.reciprocal %160 : vector<8x1xf32> -> vector<8x1xf32>
    %162 = vector.broadcast %cst_10 : f32 to vector<8x1xf32>
    %163 = arith.mulf %162, %161 : vector<8x1xf32>
    %164 = arith.mulf %161, %161 : vector<8x1xf32>
    %165 = vector.broadcast %164 : vector<8x1xf32> to vector<8x128xf32>
    %166 = arith.mulf %10, %165 : vector<8x128xf32>
    %167 = math.exp %166 : vector<8x128xf32>
    %168 = vector.broadcast %163 : vector<8x1xf32> to vector<8x128xf32>
    %169 = arith.mulf %168, %167 : vector<8x128xf32>
    %170 = arith.index_cast %c2_i32 : i32 to index
    %c0_69 = arith.constant 0 : index
    %c0_70 = arith.constant 0 : index
    %171 = vector.load %arg7[%170, %c0_69, %c0_70] : memref<4x8x128xf32, #tpu.memory_space<vmem>>, vector<1x8x128xf32>
    %172 = vector.shape_cast %171 : vector<1x8x128xf32> to vector<8x128xf32>
    %173 = vector.shape_cast %169 : vector<8x128xf32> to vector<1x8x128xf32>
    tpu.vector_store %arg7[%170, %c0_69, %c0_70], %173 {strides = array<i32>} : memref<4x8x128xf32, #tpu.memory_space<vmem>>, vector<1x8x128xf32>,
    %c3_i32 = arith.constant 3 : i32
    %174 = arith.index_cast %c3_i32 : i32 to index
    %c0_71 = arith.constant 0 : index
    %c0_72 = arith.constant 0 : index
    %175 = vector.load %arg1[%174, %c0_71, %c0_72] : memref<4x8x32xf32, #tpu.memory_space<vmem>>, vector<1x8x32xf32>
    %176 = vector.shape_cast %175 : vector<1x8x32xf32> to vector<8x32xf32>
    %177 = arith.index_cast %c3_i32 : i32 to index
    %c0_73 = arith.constant 0 : index
    %c0_74 = arith.constant 0 : index
    %178 = vector.load %arg2[%177, %c0_73, %c0_74] : memref<4x128x32xf32, #tpu.memory_space<vmem>>, vector<1x128x32xf32>
    %179 = vector.shape_cast %178 : vector<1x128x32xf32> to vector<128x32xf32>
    %180 = arith.index_cast %c3_i32 : i32 to index
    %c0_75 = arith.constant 0 : index
    %c0_76 = arith.constant 0 : index
    %181 = vector.load %arg3[%180, %c0_75, %c0_76] : memref<4x128x32xf32, #tpu.memory_space<vmem>>, vector<1x128x32xf32>
    %182 = vector.shape_cast %181 : vector<1x128x32xf32> to vector<128x32xf32>
    %cst_77 = arith.constant 0.176776692 : f32
    %183 = vector.broadcast %cst_77 : f32 to vector<8x32xf32>
    %184 = arith.mulf %176, %183 : vector<8x32xf32>
    %cst_78 = arith.constant dense<0.000000e+00> : vector<8x128xf32>
    %185 = tpu.matmul %184, %179, %cst_78 {dimension_numbers = #tpu.dot_dimension_numbers<[1], [1], [0], [0], [0, 0, 1, 0], [], []>} : vector<8x32xf32>, vector<128x32xf32>, vector<8x128xf32> -> vector<8x128xf32>
    %cst_79 = arith.constant 0xFF800000 : f32
    %186 = vector.broadcast %cst_79 : f32 to vector<8x128xf32>
    %187 = arith.select %5, %186, %185 : vector<8x128xi1>, vector<8x128xf32>
    %cst_80 = arith.constant dense<0xFF800000> : vector<8xf32>
    %188 = vector.multi_reduction <maximumf>, %187, %cst_80 [1] : vector<8x128xf32> to vector<8xf32>
    %189 = vector.shape_cast %188 : vector<8xf32> to vector<8x1xf32>
    %190 = vector.broadcast %189 : vector<8x1xf32> to vector<8x128xf32>
    %191 = arith.subf %187, %190 : vector<8x128xf32>
    %192 = math.exp %191 : vector<8x128xf32>
    %cst_81 = arith.constant dense<0.000000e+00> : vector<8xf32>
    %193 = vector.multi_reduction <add>, %192, %cst_81 [1] : vector<8x128xf32> to vector<8xf32>
    %194 = vector.shape_cast %193 : vector<8xf32> to vector<8x1xf32>
    %195 = tpu.reciprocal %194 : vector<8x1xf32> -> vector<8x1xf32>
    %196 = vector.broadcast %195 : vector<8x1xf32> to vector<8x128xf32>
    %197 = arith.mulf %192, %196 : vector<8x128xf32>
    %cst_82 = arith.constant dense<0.000000e+00> : vector<8x32xf32>
    %198 = tpu.matmul %197, %182, %cst_82 {dimension_numbers = #tpu.dot_dimension_numbers<[1], [0], [0], [1], [0, 0, 1, 1], [], []>} : vector<8x128xf32>, vector<128x32xf32>, vector<8x32xf32> -> vector<8x32xf32>
    %199 = arith.index_cast %c3_i32 : i32 to index
    %c0_83 = arith.constant 0 : index
    %c0_84 = arith.constant 0 : index
    %200 = vector.load %arg5[%199, %c0_83, %c0_84] : memref<4x8x32xf32, #tpu.memory_space<vmem>>, vector<1x8x32xf32>
    %201 = vector.shape_cast %200 : vector<1x8x32xf32> to vector<8x32xf32>
    %202 = vector.shape_cast %198 : vector<8x32xf32> to vector<1x8x32xf32>
    tpu.vector_store %arg5[%199, %c0_83, %c0_84], %202 {strides = array<i32>} : memref<4x8x32xf32, #tpu.memory_space<vmem>>, vector<1x8x32xf32>,
    %203 = arith.index_cast %c3_i32 : i32 to index
    %c0_85 = arith.constant 0 : index
    %c0_86 = arith.constant 0 : index
    %204 = vector.load %arg6[%203, %c0_85, %c0_86] : memref<4x8x128xf32, #tpu.memory_space<vmem>>, vector<1x8x128xf32>
    %205 = vector.shape_cast %204 : vector<1x8x128xf32> to vector<8x128xf32>
    %206 = vector.shape_cast %197 : vector<8x128xf32> to vector<1x8x128xf32>
    tpu.vector_store %arg6[%203, %c0_85, %c0_86], %206 {strides = array<i32>} : memref<4x8x128xf32, #tpu.memory_space<vmem>>, vector<1x8x128xf32>,
    %207 = arith.index_cast %c3_i32 : i32 to index
    %c0_87 = arith.constant 0 : index
    %c0_88 = arith.constant 0 : index
    %208 = vector.load %arg8[%207, %c0_87, %c0_88] : memref<4x8x1xf32, #tpu.memory_space<vmem>>, vector<1x8x1xf32>
    %209 = vector.shape_cast %208 : vector<1x8x1xf32> to vector<8x1xf32>
    %210 = tpu.reciprocal %209 : vector<8x1xf32> -> vector<8x1xf32>
    %211 = vector.broadcast %cst_10 : f32 to vector<8x1xf32>
    %212 = arith.mulf %211, %210 : vector<8x1xf32>
    %213 = arith.mulf %210, %210 : vector<8x1xf32>
    %214 = vector.broadcast %213 : vector<8x1xf32> to vector<8x128xf32>
    %215 = arith.mulf %10, %214 : vector<8x128xf32>
    %216 = math.exp %215 : vector<8x128xf32>
    %217 = vector.broadcast %212 : vector<8x1xf32> to vector<8x128xf32>
    %218 = arith.mulf %217, %216 : vector<8x128xf32>
    %219 = arith.index_cast %c3_i32 : i32 to index
    %c0_89 = arith.constant 0 : index
    %c0_90 = arith.constant 0 : index
    %220 = vector.load %arg7[%219, %c0_89, %c0_90] : memref<4x8x128xf32, #tpu.memory_space<vmem>>, vector<1x8x128xf32>
    %221 = vector.shape_cast %220 : vector<1x8x128xf32> to vector<8x128xf32>
    %222 = vector.shape_cast %218 : vector<8x128xf32> to vector<1x8x128xf32>
    tpu.vector_store %arg7[%219, %c0_89, %c0_90], %222 {strides = array<i32>} : memref<4x8x128xf32, #tpu.memory_space<vmem>>, vector<1x8x128xf32>,
    %c4_i32 = arith.constant 4 : i32
    return
  }
  func.func @transform_0(%arg0: i32) -> (i32, i32, i32) {
    %c0_i32 = arith.constant 0 : i32
    %c0_i32_0 = arith.constant 0 : i32
    %c0_i32_1 = arith.constant 0 : i32
    return %arg0, %c0_i32, %c0_i32_0 : i32, i32, i32
  }
  func.func @transform_1(%arg0: i32) -> (i32, i32, i32) {
    %c0_i32 = arith.constant 0 : i32
    %c0_i32_0 = arith.constant 0 : i32
    %c0_i32_1 = arith.constant 0 : i32
    return %arg0, %c0_i32, %c0_i32_0 : i32, i32, i32
  }
  func.func @transform_2(%arg0: i32) -> (i32, i32, i32) {
    %c0_i32 = arith.constant 0 : i32
    %c0_i32_0 = arith.constant 0 : i32
    %c0_i32_1 = arith.constant 0 : i32
    return %arg0, %c0_i32, %c0_i32_0 : i32, i32, i32
  }
  func.func @transform_3(%arg0: i32) -> (i32, i32, i32) {
    %c0_i32 = arith.constant 0 : i32
    %c0_i32_0 = arith.constant 0 : i32
    %c0_i32_1 = arith.constant 0 : i32
    return %arg0, %c0_i32, %c0_i32_0 : i32, i32, i32
  }
  func.func @transform_4(%arg0: i32) -> (i32, i32, i32) {
    %c0_i32 = arith.constant 0 : i32
    %c0_i32_0 = arith.constant 0 : i32
    %c0_i32_1 = arith.constant 0 : i32
    return %arg0, %c0_i32, %c0_i32_0 : i32, i32, i32
  }
  func.func @transform_5(%arg0: i32) -> (i32, i32, i32) {
    %c0_i32 = arith.constant 0 : i32
    %c0_i32_0 = arith.constant 0 : i32
    %c0_i32_1 = arith.constant 0 : i32
    return %arg0, %c0_i32, %c0_i32_0 : i32, i32, i32
  }
  func.func @transform_6(%arg0: i32) -> (i32, i32, i32) {
    %c0_i32 = arith.constant 0 : i32
    %c0_i32_0 = arith.constant 0 : i32
    %c0_i32_1 = arith.constant 0 : i32
    return %arg0, %c0_i32, %c0_i32_0 : i32, i32, i32
  }
  func.func @transform_7(%arg0: i32) -> (i32, i32, i32) {
    %c0_i32 = arith.constant 0 : i32
    %c0_i32_0 = arith.constant 0 : i32
    %c0_i32_1 = arith.constant 0 : i32
    return %arg0, %c0_i32, %c0_i32_0 : i32, i32, i32
  }
}

</mosaic_0001>

<llo_original>
// kernel: tpu_custom_call.1
$region0: #{tpu_custom_call.1}
  #allocation0 [shape = 'u32[]', space=smem, size = 0x4, offset = 0x4, fixed_abs, tag = 'smem constant byte address 0x4 - core index']
  #allocation1 [shape = 'u32[72,128]{1,0:T(1,128)}', space=vmem, size = 0x9000, scoped, tag = 'internal scratch']
  %s0 = inlined_call_operand.vmem [shape: f32[8,8,32], index: 0, kind: input, shape index: {}]
  %s1 = inlined_call_operand.vmem [shape: f32[8,128,32], index: 1, kind: input, shape index: {}]
  %s2 = inlined_call_operand.vmem [shape: f32[8,128,32], index: 2, kind: input, shape index: {}]
  %s3 = inlined_call_operand.vmem [shape: f32[8,8,1], index: 3, kind: input, shape index: {}]
  %s4 = inlined_call_operand.hbm [shape: f32[8,8,32], index: 4, kind: output, shape index: {0}]
  %s5 = inlined_call_operand.hbm [shape: f32[8,8,128], index: 5, kind: output, shape index: {1}]
  %s6 = inlined_call_operand.hbm [shape: f32[8,8,128], index: 6, kind: output, shape index: {2}]
  %s7 = inlined_call_operand.vmem [shape: f32[8,8,1], index: 7, kind: output, shape index: {3}]
  %8 = xla_tuple %s4, %s5, %s6, %s7
  %s9 = sld [smem:[#allocation0]]
  $region73: #{tpu_custom_call.1} parent=0
    _
  %s11 = ssub.s32 1, %s9
  %s12 = scalar_select 0, %s11, %s9
  $region1: #{tpu_custom_call.1} parent=0
    #allocation2 [shape = 'u8[32768]{0}', space=vmem, size = 0x8000, scoped, tag = 'output window, operand 0']
    #allocation3 [shape = 's32[2]{0}', space=sflag, size = 0x8, scoped, tag = 'scoped memory for tpu_custom_call.1']
    #allocation4 [shape = 'u8[32768]{0}', space=vmem, size = 0x8000, scoped, tag = 'output window, operand 1']
    #allocation5 [shape = 's32[2]{0}', space=sflag, size = 0x8, scoped, tag = 'scoped memory for tpu_custom_call.1']
    #allocation6 [shape = 'u8[32768]{0}', space=vmem, size = 0x8000, scoped, tag = 'output window, operand 2']
    %13 = vsyncpa [#allocation3], 0
    %s14 = scalar_lea.sflag [#allocation3], 1
    %15 = vsyncpa %s14, 0
    %16 = vsyncpa [#allocation5], 0
    %s17 = scalar_lea.sflag [#allocation5], 1
    %18 = vsyncpa %s17, 0
    loop: start=0, step=1, limit=4
    $region2: #{tpu_custom_call.1} parent=1 // loop_pre_header
      _
    $region3: #{tpu_custom_call.1} parent=1 // loop_header
      %s20 = sphi 0, %s24
      %p21 = scmp.ge.s32.totalorder %s20, 4
      %s30 = sphi 0, %s32
      %s33 = sphi 0, %s30
      %s34 = sphi 0, %s33
      %s50 = sphi 0, %s34
      %s56 = sphi 0, %s58
      %s59 = sphi 0, %s56
      %s60 = sphi 0, %s59
      %s76 = sphi 0, %s60
      %s82 = sphi 0, %s84
      %s85 = sphi 0, %s82
      %s86 = sphi 0, %s85
      %s102 = sphi 0, %s86
      %s108 = sphi 0, %s110
      %s111 = sphi 0, %s108
      %s112 = sphi 0, %s111
      %s128 = sphi 0, %s112
      %s134 = sphi 0, %s136
      %s137 = sphi 0, %s134
      %s138 = sphi 0, %s137
      %s154 = sphi 0, %s138
      %s160 = sphi 0, %s162
      %s163 = sphi 0, %s160
      %s164 = sphi 0, %s163
      %s180 = sphi 0, %s164
      %s186 = sphi 0, %s188
      %s189 = sphi 0, %s186
      %s190 = sphi 0, %s189
      %s206 = sphi 0, %s190
      %s212 = sphi 0, %s214
      %s215 = sphi 0, %s212
      %s216 = sphi 0, %s215
      %s232 = sphi 0, %s216
    $region4: #{tpu_custom_call.1} parent=1 // loop_header_branch
      %23 = sbr.rel (%p21) target = $region8
    $region5: #{tpu_custom_call.1} parent=1 // loop_body
      %s25 = ssub.s32 %s20, 1
      %s26 = ssub.s32 %s20, 2
      %s27 = sadd.s32 %s20, 1
      %s28 = ssub.s32 %s20, %s27
      %p29 = scmp.eq.s32.totalorder %s28, 0
      %s31 = sadd.s32 %s30, 1
      %s32 = scalar_select %p29, %s30, %s31
      %p35 = pneg %p29
      %p36 = scmp.eq.s32.totalorder %s20, 1
      %p37 = por %p35, %p36
      %p38 = scmp.ne.s32.totalorder %s30, %s33
      %p39 = scmp.eq.s32.totalorder %s20, 0
      %p40 = por %p38, %p39
      %p41 = scmp.ne.s32.totalorder %s30, %s33
      %p42 = scmp.eq.s32.totalorder %s25, 1
      %p43 = por %p41, %p42
      %p44 = scmp.ne.s32.totalorder %s33, %s34
      %p45 = scmp.eq.s32.totalorder %s25, 0
      %p46 = por %p44, %p45
      %p47 = scmp.ne.s32.totalorder %s33, %s34
      %p48 = scmp.eq.s32.totalorder %s26, 1
      %p49 = por %p47, %p48
      %p51 = scmp.ne.s32.totalorder %s34, %s50
      %p52 = scmp.eq.s32.totalorder %s26, 0
      %p53 = por %p51, %p52
      %s54 = ssub.s32 %s20, %s27
      %p55 = scmp.eq.s32.totalorder %s54, 0
      %s57 = sadd.s32 %s56, 1
      %s58 = scalar_select %p55, %s56, %s57
      %p61 = pneg %p55
      %p62 = scmp.eq.s32.totalorder %s20, 1
      %p63 = por %p61, %p62
      %p64 = scmp.ne.s32.totalorder %s56, %s59
      %p65 = scmp.eq.s32.totalorder %s20, 0
      %p66 = por %p64, %p65
      %p67 = scmp.ne.s32.totalorder %s56, %s59
      %p68 = scmp.eq.s32.totalorder %s25, 1
      %p69 = por %p67, %p68
      %p70 = scmp.ne.s32.totalorder %s59, %s60
      %p71 = scmp.eq.s32.totalorder %s25, 0
      %p72 = por %p70, %p71
      %p73 = scmp.ne.s32.totalorder %s59, %s60
      %p74 = scmp.eq.s32.totalorder %s26, 1
      %p75 = por %p73, %p74
      %p77 = scmp.ne.s32.totalorder %s60, %s76
      %p78 = scmp.eq.s32.totalorder %s26, 0
      %p79 = por %p77, %p78
      %s80 = ssub.s32 %s20, %s27
      %p81 = scmp.eq.s32.totalorder %s80, 0
      %s83 = sadd.s32 %s82, 1
      %s84 = scalar_select %p81, %s82, %s83
      %p87 = pneg %p81
      %p88 = scmp.eq.s32.totalorder %s20, 1
      %p89 = por %p87, %p88
      %p90 = scmp.ne.s32.totalorder %s82, %s85
      %p91 = scmp.eq.s32.totalorder %s20, 0
      %p92 = por %p90, %p91
      %p93 = scmp.ne.s32.totalorder %s82, %s85
      %p94 = scmp.eq.s32.totalorder %s25, 1
      %p95 = por %p93, %p94
      %p96 = scmp.ne.s32.totalorder %s85, %s86
      %p97 = scmp.eq.s32.totalorder %s25, 0
      %p98 = por %p96, %p97
      %p99 = scmp.ne.s32.totalorder %s85, %s86
      %p100 = scmp.eq.s32.totalorder %s26, 1
      %p101 = por %p99, %p100
      %p103 = scmp.ne.s32.totalorder %s86, %s102
      %p104 = scmp.eq.s32.totalorder %s26, 0
      %p105 = por %p103, %p104
      %s106 = ssub.s32 %s20, %s27
      %p107 = scmp.eq.s32.totalorder %s106, 0
      %s109 = sadd.s32 %s108, 1
      %s110 = scalar_select %p107, %s108, %s109
      %p113 = pneg %p107
      %p114 = scmp.eq.s32.totalorder %s20, 1
      %p115 = por %p113, %p114
      %p116 = scmp.ne.s32.totalorder %s108, %s111
      %p117 = scmp.eq.s32.totalorder %s20, 0
      %p118 = por %p116, %p117
      %p119 = scmp.ne.s32.totalorder %s108, %s111
      %p120 = scmp.eq.s32.totalorder %s25, 1
      %p121 = por %p119, %p120
      %p122 = scmp.ne.s32.totalorder %s111, %s112
      %p123 = scmp.eq.s32.totalorder %s25, 0
      %p124 = por %p122, %p123
      %p125 = scmp.ne.s32.totalorder %s111, %s112
      %p126 = scmp.eq.s32.totalorder %s26, 1
      %p127 = por %p125, %p126
      %p129 = scmp.ne.s32.totalorder %s112, %s128
      %p130 = scmp.eq.s32.totalorder %s26, 0
      %p131 = por %p129, %p130
      %s132 = ssub.s32 %s20, %s27
      %p133 = scmp.eq.s32.totalorder %s132, 0
      %s135 = sadd.s32 %s134, 1
      %s136 = scalar_select %p133, %s134, %s135
      %p139 = pneg %p133
      %p140 = scmp.eq.s32.totalorder %s20, 1
      %p141 = por %p139, %p140
      %p142 = scmp.ne.s32.totalorder %s134, %s137
      %p143 = scmp.eq.s32.totalorder %s20, 0
      %p144 = por %p142, %p143
      %p145 = scmp.ne.s32.totalorder %s134, %s137
      %p146 = scmp.eq.s32.totalorder %s25, 1
      %p147 = por %p145, %p146
      %p148 = scmp.ne.s32.totalorder %s137, %s138
      %p149 = scmp.eq.s32.totalorder %s25, 0
      %p150 = por %p148, %p149
      %p151 = scmp.ne.s32.totalorder %s137, %s138
      %p152 = scmp.eq.s32.totalorder %s26, 1
      %p153 = por %p151, %p152
      %p155 = scmp.ne.s32.totalorder %s138, %s154
      %p156 = scmp.eq.s32.totalorder %s26, 0
      %p157 = por %p155, %p156
      %s158 = ssub.s32 %s20, %s27
      %p159 = scmp.eq.s32.totalorder %s158, 0
      %s161 = sadd.s32 %s160, 1
      %s162 = scalar_select %p159, %s160, %s161
      %p165 = pneg %p159
      %p166 = scmp.eq.s32.totalorder %s20, 1
      %p167 = por %p165, %p166
      %p168 = scmp.ne.s32.totalorder %s160, %s163
      %p169 = scmp.eq.s32.totalorder %s20, 0
      %p170 = por %p168, %p169
      %p171 = scmp.ne.s32.totalorder %s160, %s163
      %p172 = scmp.eq.s32.totalorder %s25, 1
      %p173 = por %p171, %p172
      %p174 = scmp.ne.s32.totalorder %s163, %s164
      %p175 = scmp.eq.s32.totalorder %s25, 0
      %p176 = por %p174, %p175
      %p177 = scmp.ne.s32.totalorder %s163, %s164
      %p178 = scmp.eq.s32.totalorder %s26, 1
      %p179 = por %p177, %p178
      %p181 = scmp.ne.s32.totalorder %s164, %s180
      %p182 = scmp.eq.s32.totalorder %s26, 0
      %p183 = por %p181, %p182
      %s184 = ssub.s32 %s20, %s27
      %p185 = scmp.eq.s32.totalorder %s184, 0
      %s187 = sadd.s32 %s186, 1
      %s188 = scalar_select %p185, %s186, %s187
      %p191 = pneg %p185
      %p192 = scmp.eq.s32.totalorder %s20, 1
      %p193 = por %p191, %p192
      %p194 = scmp.ne.s32.totalorder %s186, %s189
      %p195 = scmp.eq.s32.totalorder %s20, 0
      %p196 = por %p194, %p195
      %p197 = scmp.ne.s32.totalorder %s186, %s189
      %p198 = scmp.eq.s32.totalorder %s25, 1
      %p199 = por %p197, %p198
      %p200 = scmp.ne.s32.totalorder %s189, %s190
      %p201 = scmp.eq.s32.totalorder %s25, 0
      %p202 = por %p200, %p201
      %p203 = scmp.ne.s32.totalorder %s189, %s190
      %p204 = scmp.eq.s32.totalorder %s26, 1
      %p205 = por %p203, %p204
      %p207 = scmp.ne.s32.totalorder %s190, %s206
      %p208 = scmp.eq.s32.totalorder %s26, 0
      %p209 = por %p207, %p208
      %s210 = ssub.s32 %s20, %s27
      %p211 = scmp.eq.s32.totalorder %s210, 0
      %s213 = sadd.s32 %s212, 1
      %s214 = scalar_select %p211, %s212, %s213
      %p217 = pneg %p211
      %p218 = scmp.eq.s32.totalorder %s20, 1
      %p219 = por %p217, %p218
      %p220 = scmp.ne.s32.totalorder %s212, %s215
      %p221 = scmp.eq.s32.totalorder %s20, 0
      %p222 = por %p220, %p221
      %p223 = scmp.ne.s32.totalorder %s212, %s215
      %p224 = scmp.eq.s32.totalorder %s25, 1
      %p225 = por %p223, %p224
      %p226 = scmp.ne.s32.totalorder %s215, %s216
      %p227 = scmp.eq.s32.totalorder %s25, 0
      %p228 = por %p226, %p227
      %p229 = scmp.ne.s32.totalorder %s215, %s216
      %p230 = scmp.eq.s32.totalorder %s26, 1
      %p231 = por %p229, %p230
      %p233 = scmp.ne.s32.totalorder %s216, %s232
      %p234 = scmp.eq.s32.totalorder %s26, 0
      %p235 = por %p233, %p234
      %p236 = scmp.le.s32.totalorder 1, %s20
      %p237 = scmp.lt.s32.totalorder %s20, 3
      %p238 = pnand %p236, %p237
      %p239 = pneg %p238
      // Predicated region
      $region9: #{tpu_custom_call.1} parent=5 // pred_check
        _
      $region10: #{tpu_custom_call.1} parent=5 // pred_check_branch
        %241 = sbr.rel (%p238) target = $region12
      $region11: #{tpu_custom_call.1} parent=5 // pred_region
        %s242 = ssub.s32 %s20, 1
      $region12: #{tpu_custom_call.1} parent=5 // pred_fallthru
        _
      %p243 = scmp.lt.s32.totalorder %s20, 2
      // Predicated region
      $region13: #{tpu_custom_call.1} parent=5 // pred_check
        %p244 = pneg %p243
      $region14: #{tpu_custom_call.1} parent=5 // pred_check_branch
        %246 = sbr.rel (%p244) target = $region16
      $region15: #{tpu_custom_call.1} parent=5 // pred_region
        // Predicated region
        $region17: #{tpu_custom_call.1} parent=15 // pred_check
          %p247 = pneg %p40
        $region18: #{tpu_custom_call.1} parent=15 // pred_check_branch
          %249 = sbr.rel (%p247) target = $region20
        $region19: #{tpu_custom_call.1} parent=15 // pred_region
          %s250 = smul.u32 4, %s20
          %p251 = scmp.lt.s32.totalorder %s250, 7
          %s252 = scalar_select %p251, %s250, 7
          %s253 = smul.addr %s252, 8
          %s254 = scalar_lea.vmem %s0, %s253
          %s255 = smul.u32 4, %s20
        $region20: #{tpu_custom_call.1} parent=15 // pred_fallthru
          _
        // Predicated region
        $region21: #{tpu_custom_call.1} parent=15 // pred_check
          %p256 = pneg %p66
        $region22: #{tpu_custom_call.1} parent=15 // pred_check_branch
          %258 = sbr.rel (%p256) target = $region24
        $region23: #{tpu_custom_call.1} parent=15 // pred_region
          %s259 = smul.u32 4, %s20
          %p260 = scmp.lt.s32.totalorder %s259, 7
          %s261 = scalar_select %p260, %s259, 7
          %s262 = smul.addr %s261, 16
          %s263 = smul.addr %s262, 8
          %s264 = scalar_lea.vmem %s1, %s263
          %s265 = smul.u32 4, %s20
        $region24: #{tpu_custom_call.1} parent=15 // pred_fallthru
          _
        // Predicated region
        $region25: #{tpu_custom_call.1} parent=15 // pred_check
          %p266 = pneg %p92
        $region26: #{tpu_custom_call.1} parent=15 // pred_check_branch
          %268 = sbr.rel (%p266) target = $region28
        $region27: #{tpu_custom_call.1} parent=15 // pred_region
          %s269 = smul.u32 4, %s20
          %p270 = scmp.lt.s32.totalorder %s269, 7
          %s271 = scalar_select %p270, %s269, 7
          %s272 = smul.addr %s271, 16
          %s273 = smul.addr %s272, 8
          %s274 = scalar_lea.vmem %s2, %s273
          %s275 = smul.u32 4, %s20
        $region28: #{tpu_custom_call.1} parent=15 // pred_fallthru
          _
        // Predicated region
        $region29: #{tpu_custom_call.1} parent=15 // pred_check
          %p276 = pneg %p118
        $region30: #{tpu_custom_call.1} parent=15 // pred_check_branch
          %278 = sbr.rel (%p276) target = $region32
        $region31: #{tpu_custom_call.1} parent=15 // pred_region
          %s279 = smul.u32 4, %s20
          %p280 = scmp.lt.s32.totalorder %s279, 7
          %s281 = scalar_select %p280, %s279, 7
          %s282 = smul.addr %s281, 8
          %s283 = scalar_lea.vmem %s3, %s282
          %s284 = smul.u32 4, %s20
        $region32: #{tpu_custom_call.1} parent=15 // pred_fallthru
          _
      $region16: #{tpu_custom_call.1} parent=5 // pred_fallthru
        _
      %p285 = scmp.le.s32.totalorder 1, %s20
      %p286 = scmp.lt.s32.totalorder %s20, 3
      %p287 = pnand %p285, %p286
      %p288 = pneg %p287
      // Predicated region
      $region33: #{tpu_custom_call.1} parent=5 // pred_check
        _
      $region34: #{tpu_custom_call.1} parent=5 // pred_check_branch
        %290 = sbr.rel (%p287) target = $region36
      $region35: #{tpu_custom_call.1} parent=5 // pred_region
        %s291 = ssub.s32 %s20, 1
        %s292 = smul.u32 4, %s25
        %p293 = scmp.lt.s32.totalorder %s292, 7
        %s294 = scalar_select %p293, %s292, 7
        %s295 = smul.addr %s294, 8
        %s296 = scalar_lea.vmem %s0, %s295
        %p297 = pneg %p46
        %p298 = pneg %p43
        %s299 = smul.u32 4, %s25
        %p300 = scmp.lt.s32.totalorder %s299, 7
        %s301 = scalar_select %p300, %s299, 7
        %s302 = smul.addr %s301, 16
        %s303 = smul.addr %s302, 8
        %s304 = scalar_lea.vmem %s1, %s303
        %p305 = pneg %p72
        %p306 = pneg %p69
        %s307 = smul.u32 4, %s25
        %p308 = scmp.lt.s32.totalorder %s307, 7
        %s309 = scalar_select %p308, %s307, 7
        %s310 = smul.addr %s309, 16
        %s311 = smul.addr %s310, 8
        %s312 = scalar_lea.vmem %s2, %s311
        %p313 = pneg %p98
        %p314 = pneg %p95
        %s315 = smul.u32 4, %s25
        %p316 = scmp.lt.s32.totalorder %s315, 7
        %s317 = scalar_select %p316, %s315, 7
        %s318 = smul.addr %s317, 8
        %s319 = scalar_lea.vmem %s3, %s318
        %p320 = pneg %p124
        %p321 = pneg %p121
        %p322 = pneg %p150
        %p323 = pneg %p147
        %s324 = sand.u32 %s137, 1
        %s325 = scalar_lea.sflag [#allocation3], %s324
        %s326 = sand.u32 %s137, 1
        %s327 = smul.addr %s326, 32
        %s328 = scalar_lea.vmem [#allocation2], %s327
        %p329 = pneg %p176
        %p330 = pneg %p173
        %s331 = sand.u32 %s25, 1
        %s332 = scalar_lea.sflag [#allocation5], %s331
        %s333 = sand.u32 %s163, 1
        %s334 = smul.addr %s333, 32
        %s335 = scalar_lea.vmem [#allocation4], %s334
        %p336 = pneg %p202
        %p337 = pneg %p199
        %s338 = sand.u32 %s25, 1
        %s339 = scalar_lea.sflag [#allocation5], %s338
        %s340 = sand.u32 %s189, 1
        %s341 = smul.addr %s340, 32
        %s342 = scalar_lea.vmem [#allocation6], %s341
        %p343 = pneg %p228
        %p344 = pneg %p225
        %s345 = smul.u32 4, %s25
        %p346 = scmp.lt.s32.totalorder %s345, 7
        %s347 = scalar_select %p346, %s345, 7
        %s348 = smul.addr %s347, 8
        %s349 = scalar_lea.vmem %s7, %s348
        %s350 = smul.u32 4, %s25
        %p351 = scmp.lt.s32.totalorder %s350, 7
        %s352 = scalar_select %p351, %s350, 7
        %s353 = smul.addr %s352, 8
        %s354 = scalar_lea.vmem %s0, %s353
        %s355 = smul.u32 4, %s25
        %s356 = smul.u32 4, %s25
        %p357 = scmp.lt.s32.totalorder %s356, 7
        %s358 = scalar_select %p357, %s356, 7
        %s359 = smul.addr %s358, 16
        %s360 = smul.addr %s359, 8
        %s361 = scalar_lea.vmem %s1, %s360
        %s362 = smul.u32 4, %s25
        %s363 = smul.u32 4, %s25
        %p364 = scmp.lt.s32.totalorder %s363, 7
        %s365 = scalar_select %p364, %s363, 7
        %s366 = smul.addr %s365, 16
        %s367 = smul.addr %s366, 8
        %s368 = scalar_lea.vmem %s2, %s367
        %s369 = smul.u32 4, %s25
        %s370 = smul.u32 4, %s25
        %p371 = scmp.lt.s32.totalorder %s370, 7
        %s372 = scalar_select %p371, %s370, 7
        %s373 = smul.addr %s372, 8
        %s374 = scalar_lea.vmem %s3, %s373
        %s375 = smul.u32 4, %s25
        %s376 = smul.u32 4, %s25
        %s377 = smul.u32 4, %s25
        %s378 = smul.u32 4, %s25
        %s379 = smul.u32 4, %s25
        %p380 = scmp.lt.s32.totalorder %s379, 7
        %s381 = scalar_select %p380, %s379, 7
        %s382 = smul.addr %s381, 8
        %s383 = scalar_lea.vmem %s7, %s382
        %s384 = smul.u32 4, %s25
        %v385 = vlaneseq
        %v386 = vshrl.u32 %v385, 7
        %v387 = vlaneseq
        %v388 = vand.u32 %v387, 127
        %vm389 = vcmp.ge.s32.totalorder %v388, 8
        %vm390 = vcmp.gt.s32.totalorder %v388, %v386
        %vm391 = vmor %vm389, %vm390
        %v392 = vsub.s32 %v386, %v388
        %v393 = vcvt.s32.f32 %v392
        %v394 = vmul.f32 %v393, -0.5
        %v395 = vmul.f32 %v394, %v393
        %v396 = vld [vmem:[%s374] sm:$0xff]
        %v397 = vld [vmem:[%s374 + $0x8] sm:$0xff]
        %v398 = vld [vmem:[%s374 + $0x10] sm:$0xff]
        %v399 = vld [vmem:[%s374 + $0x18] sm:$0xff]
        %v400 = vmul.f32 %v396, 5.0
        %v401 = vmul.f32 %v397, 5.0
        %v402 = vmul.f32 %v398, 5.0
        %v403 = vmul.f32 %v399, 5.0
        %v404 = vxor.u32 %v400, 2147483648
        %v405 = vxor.u32 %v401, 2147483648
        %v406 = vxor.u32 %v402, 2147483648
        %v407 = vxor.u32 %v403, 2147483648
        %v408 = vmul.f32 %v404, 1.442695
        %v409 = vpow.pop %v408
        %v410 = vmul.f32 %v405, 1.442695
        %v411 = vpow.pop %v410
        %v412 = vmul.f32 %v406, 1.442695
        %v413 = vpow.pop %v412
        %v414 = vmul.f32 %v407, 1.442695
        %v415 = vpow.pop %v414
        %v416 = vadd.f32 %v409, 1.0
        %v417 = vadd.f32 %v411, 1.0
        %v418 = vadd.f32 %v413, 1.0
        %v419 = vadd.f32 %v415, 1.0
        %v420 = vrcp.pop %v416
        %v421 = vmul.f32 %v416, %v420
        %v422 = vsub.f32 1.0, %v421
        %v423 = vmul.f32 %v420, %v422
        %v424 = vadd.f32 %v420, %v423
        %vm425 = vweird.f32 %v416
        %vm426 = vweird.f32 %v420
        %vm427 = vmor %vm425, %vm426
        %v428 = vsel %vm427, %v420, %v424
        %v429 = vand.u32 2147483647, %v416
        %vm430 = vcmp.eq.f32.partialorder %v429, 8.507059e+37
        %v431 = vand.u32 %v416, 2147483648
        %v432 = vor.u32 1.1754944e-38, %v431
        %v433 = vsel %vm430, %v432, %v428
        %v434 = vmul.f32 1.0, %v433
        %v435 = vrcp.pop %v417
        %v436 = vmul.f32 %v417, %v435
        %v437 = vsub.f32 1.0, %v436
        %v438 = vmul.f32 %v435, %v437
        %v439 = vadd.f32 %v435, %v438
        %vm440 = vweird.f32 %v417
        %vm441 = vweird.f32 %v435
        %vm442 = vmor %vm440, %vm441
        %v443 = vsel %vm442, %v435, %v439
        %v444 = vand.u32 2147483647, %v417
        %vm445 = vcmp.eq.f32.partialorder %v444, 8.507059e+37
        %v446 = vand.u32 %v417, 2147483648
        %v447 = vor.u32 1.1754944e-38, %v446
        %v448 = vsel %vm445, %v447, %v443
        %v449 = vmul.f32 1.0, %v448
        %v450 = vrcp.pop %v418
        %v451 = vmul.f32 %v418, %v450
        %v452 = vsub.f32 1.0, %v451
        %v453 = vmul.f32 %v450, %v452
        %v454 = vadd.f32 %v450, %v453
        %vm455 = vweird.f32 %v418
        %vm456 = vweird.f32 %v450
        %vm457 = vmor %vm455, %vm456
        %v458 = vsel %vm457, %v450, %v454
        %v459 = vand.u32 2147483647, %v418
        %vm460 = vcmp.eq.f32.partialorder %v459, 8.507059e+37
        %v461 = vand.u32 %v418, 2147483648
        %v462 = vor.u32 1.1754944e-38, %v461
        %v463 = vsel %vm460, %v462, %v458
        %v464 = vmul.f32 1.0, %v463
        %v465 = vrcp.pop %v419
        %v466 = vmul.f32 %v419, %v465
        %v467 = vsub.f32 1.0, %v466
        %v468 = vmul.f32 %v465, %v467
        %v469 = vadd.f32 %v465, %v468
        %vm470 = vweird.f32 %v419
        %vm471 = vweird.f32 %v465
        %vm472 = vmor %vm470, %vm471
        %v473 = vsel %vm472, %v465, %v469
        %v474 = vand.u32 2147483647, %v419
        %vm475 = vcmp.eq.f32.partialorder %v474, 8.507059e+37
        %v476 = vand.u32 %v419, 2147483648
        %v477 = vor.u32 1.1754944e-38, %v476
        %v478 = vsel %vm475, %v477, %v473
        %v479 = vmul.f32 1.0, %v478
        %v480 = vadd.f32 %v434, 1e-05
        %v481 = vadd.f32 %v449, 1e-05
        %v482 = vadd.f32 %v464, 1e-05
        %v483 = vadd.f32 %v479, 1e-05
        %v484 = vmul.f32 %v480, 1.0986123
        %v485 = vmul.f32 %v481, 1.0986123
        %v486 = vmul.f32 %v482, 1.0986123
        %v487 = vmul.f32 %v483, 1.0986123
        %v488 = vmul.f32 %v484, 1.442695
        %v489 = vpow.pop %v488
        %v490 = vmul.f32 %v485, 1.442695
        %v491 = vpow.pop %v490
        %v492 = vmul.f32 %v486, 1.442695
        %v493 = vpow.pop %v492
        %v494 = vmul.f32 %v487, 1.442695
        %v495 = vpow.pop %v494
        %v496 = vsub.f32 %v489, 1.0
        %v497 = vsub.f32 %v491, 1.0
        %v498 = vsub.f32 %v493, 1.0
        %v499 = vsub.f32 %v495, 1.0
        %vm500 = vcmask 7168
        %501 = vst.msk [vmem:[%s383] sm:$0xff] %vm500, %v496
        %502 = vst.msk [vmem:[%s383 + $0x8] sm:$0xff] %vm500, %v497
        %503 = vst.msk [vmem:[%s383 + $0x10] sm:$0xff] %vm500, %v498
        %504 = vst.msk [vmem:[%s383 + $0x18] sm:$0xff] %vm500, %v499
        %v505 = vld [vmem:[%s354] sm:$0xff]
        %v506 = vld [vmem:[%s361] sm:$0xff]
        %v507 = vld [vmem:[%s361 + $0x8] sm:$0xff]
        %v508 = vld [vmem:[%s361 + $0x10] sm:$0xff]
        %v509 = vld [vmem:[%s361 + $0x18] sm:$0xff]
        %v510 = vld [vmem:[%s361 + $0x20] sm:$0xff]
        %v511 = vld [vmem:[%s361 + $0x28] sm:$0xff]
        %v512 = vld [vmem:[%s361 + $0x30] sm:$0xff]
        %v513 = vld [vmem:[%s361 + $0x38] sm:$0xff]
        %v514 = vld [vmem:[%s361 + $0x40] sm:$0xff]
        %v515 = vld [vmem:[%s361 + $0x48] sm:$0xff]
        %v516 = vld [vmem:[%s361 + $0x50] sm:$0xff]
        %v517 = vld [vmem:[%s361 + $0x58] sm:$0xff]
        %v518 = vld [vmem:[%s361 + $0x60] sm:$0xff]
        %v519 = vld [vmem:[%s361 + $0x68] sm:$0xff]
        %v520 = vld [vmem:[%s361 + $0x70] sm:$0xff]
        %v521 = vld [vmem:[%s361 + $0x78] sm:$0xff]
        %v522 = vld [vmem:[%s368] sm:$0xff]
        %v523 = vld [vmem:[%s368 + $0x8] sm:$0xff]
        %v524 = vld [vmem:[%s368 + $0x10] sm:$0xff]
        %v525 = vld [vmem:[%s368 + $0x18] sm:$0xff]
        %v526 = vld [vmem:[%s368 + $0x20] sm:$0xff]
        %v527 = vld [vmem:[%s368 + $0x28] sm:$0xff]
        %v528 = vld [vmem:[%s368 + $0x30] sm:$0xff]
        %v529 = vld [vmem:[%s368 + $0x38] sm:$0xff]
        %v530 = vld [vmem:[%s368 + $0x40] sm:$0xff]
        %v531 = vld [vmem:[%s368 + $0x48] sm:$0xff]
        %v532 = vld [vmem:[%s368 + $0x50] sm:$0xff]
        %v533 = vld [vmem:[%s368 + $0x58] sm:$0xff]
        %v534 = vld [vmem:[%s368 + $0x60] sm:$0xff]
        %v535 = vld [vmem:[%s368 + $0x68] sm:$0xff]
        %v536 = vld [vmem:[%s368 + $0x70] sm:$0xff]
        %v537 = vld [vmem:[%s368 + $0x78] sm:$0xff]
        %v538 = vmul.f32 %v505, 0.17677669
        %vm539 = vcmask 261120
        %v541 = vsel %vm539, %v538, 0
        %v544 = vsel %vm539, %v506, 0
        %v547 = vsel %vm539, %v507, 0
        %v550 = vsel %vm539, %v508, 0
        %v553 = vsel %vm539, %v509, 0
        %v556 = vsel %vm539, %v510, 0
        %v559 = vsel %vm539, %v511, 0
        %v562 = vsel %vm539, %v512, 0
        %v565 = vsel %vm539, %v513, 0
        %v568 = vsel %vm539, %v514, 0
        %v571 = vsel %vm539, %v515, 0
        %v574 = vsel %vm539, %v516, 0
        %v577 = vsel %vm539, %v517, 0
        %v580 = vsel %vm539, %v518, 0
        %v583 = vsel %vm539, %v519, 0
        %v586 = vsel %vm539, %v520, 0
        %v589 = vsel %vm539, %v521, 0
        %591 = vmatpush.xpose.msra.mxu0 %v589
        %592 = vmatpush.xpose.msra.mxu0 %v586
        %593 = vmatpush.xpose.msra.mxu0 %v583
        %594 = vmatpush.xpose.msra.mxu0 %v580
        %595 = vmatpush.xpose.msra.mxu0 %v577
        %596 = vmatpush.xpose.msra.mxu0 %v574
        %597 = vmatpush.xpose.msra.mxu0 %v571
        %598 = vmatpush.xpose.msra.mxu0 %v568
        %599 = vmatpush.xpose.msra.mxu0 %v565
        %600 = vmatpush.xpose.msra.mxu0 %v562
        %601 = vmatpush.xpose.msra.mxu0 %v559
        %602 = vmatpush.xpose.msra.mxu0 %v556
        %603 = vmatpush.xpose.msra.mxu0 %v553
        %604 = vmatpush.xpose.msra.mxu0 %v550
        %605 = vmatpush.xpose.msra.mxu0 %v547
        %606 = vmatpush.xpose.msra.mxu0 %v544
        %607 = vmatmul.f32.gmra.mxu0 %v541
        %v608 = vpop.f32.mrf.mxu0
        %v609 = vadd.f32 0.0, %v608
        %610 = vdwg.mxu0
        %v611 = vsel %vm391, -inf, %v609
        %612 = vmax.xlane.f32.xlu0 %v611
        %v613 = vpop.xlane.xlu0 %612
        %v614 = vsub.f32 %v611, %v613
        %v615 = vmul.f32 %v614, 1.442695
        %v616 = vpow.pop %v615
        %617 = vadd.xlane.f32.xlu0 %v616
        %v618 = vpop.xlane.xlu0 %617
        %v619 = vrcp.pop %v618
        %v620 = vmul.f32 %v618, %v619
        %v621 = vsub.f32 1.0, %v620
        %v622 = vmul.f32 %v619, %v621
        %v623 = vadd.f32 %v619, %v622
        %vm624 = vweird.f32 %v618
        %vm625 = vweird.f32 %v619
        %vm626 = vmor %vm624, %vm625
        %v627 = vsel %vm626, %v619, %v623
        %v628 = vand.u32 2147483647, %v618
        %vm629 = vcmp.eq.f32.partialorder %v628, 8.507059e+37
        %v630 = vand.u32 %v618, 2147483648
        %v631 = vor.u32 1.1754944e-38, %v630
        %v632 = vsel %vm629, %v631, %v627
        %v633 = vmul.f32 %v616, %v632
        %634 = vmatpush.msra.mxu0 %v537
        %635 = vmatpush.msra.mxu0 %v536
        %636 = vmatpush.msra.mxu0 %v535
        %637 = vmatpush.msra.mxu0 %v534
        %638 = vmatpush.msra.mxu0 %v533
        %639 = vmatpush.msra.mxu0 %v532
        %640 = vmatpush.msra.mxu0 %v531
        %641 = vmatpush.msra.mxu0 %v530
        %642 = vmatpush.msra.mxu0 %v529
        %643 = vmatpush.msra.mxu0 %v528
        %644 = vmatpush.msra.mxu0 %v527
        %645 = vmatpush.msra.mxu0 %v526
        %646 = vmatpush.msra.mxu0 %v525
        %647 = vmatpush.msra.mxu0 %v524
        %648 = vmatpush.msra.mxu0 %v523
        %649 = vmatpush.msra.mxu0 %v522
        %650 = vmatmul.f32.gmra.mxu0 %v633
        %v651 = vpop.f32.mrf.mxu0
        %v652 = vadd.f32 0.0, %v651
        %653 = vdwg.mxu0
        %654 = vst.msk [vmem:[%s328] sm:$0xff] %vm539, %v652
        %655 = vst [vmem:[%s335] sm:$0xff] %v633
        %v656 = vld [vmem:[%s383] sm:$0xff]
        %v657 = vrcp.pop %v656
        %v658 = vmul.f32 %v656, %v657
        %v659 = vsub.f32 1.0, %v658
        %v660 = vmul.f32 %v657, %v659
        %v661 = vadd.f32 %v657, %v660
        %vm662 = vweird.f32 %v656
        %vm663 = vweird.f32 %v657
        %vm664 = vmor %vm662, %vm663
        %v665 = vsel %vm664, %v657, %v661
        %v666 = vand.u32 2147483647, %v656
        %vm667 = vcmp.eq.f32.partialorder %v666, 8.507059e+37
        %v668 = vand.u32 %v656, 2147483648
        %v669 = vor.u32 1.1754944e-38, %v668
        %v670 = vsel %vm667, %v669, %v665
        %v671 = vmul.f32 %v670, 0.3989423
        %v672 = vmul.f32 %v670, %v670
        %674 = vset.pattern.permute.xlu0 0
        %675 = vperm.xlu0 %674, %v672
        %v676 = vpop.permute.xlu0 %675
        %v678 = vmul.f32 %v395, %v676
        %v679 = vmul.f32 %v678, 1.442695
        %v680 = vpow.pop %v679
        %682 = vset.pattern.permute.xlu0 0
        %683 = vperm.xlu0 %682, %v671
        %v684 = vpop.permute.xlu0 %683
        %v686 = vmul.f32 %v684, %v680
        %687 = vst [vmem:[%s342] sm:$0xff] %v686
        %s688 = scalar_lea.vmem %s354, 8
        %v689 = vld [vmem:[%s688] sm:$0xff]
        %s690 = scalar_lea.vmem %s361, 128
        %v691 = vld [vmem:[%s690] sm:$0xff]
        %v692 = vld [vmem:[%s690 + $0x8] sm:$0xff]
        %v693 = vld [vmem:[%s690 + $0x10] sm:$0xff]
        %v694 = vld [vmem:[%s690 + $0x18] sm:$0xff]
        %v695 = vld [vmem:[%s690 + $0x20] sm:$0xff]
        %v696 = vld [vmem:[%s690 + $0x28] sm:$0xff]
        %v697 = vld [vmem:[%s690 + $0x30] sm:$0xff]
        %v698 = vld [vmem:[%s690 + $0x38] sm:$0xff]
        %v699 = vld [vmem:[%s690 + $0x40] sm:$0xff]
        %v700 = vld [vmem:[%s690 + $0x48] sm:$0xff]
        %v701 = vld [vmem:[%s690 + $0x50] sm:$0xff]
        %v702 = vld [vmem:[%s690 + $0x58] sm:$0xff]
        %v703 = vld [vmem:[%s690 + $0x60] sm:$0xff]
        %v704 = vld [vmem:[%s690 + $0x68] sm:$0xff]
        %v705 = vld [vmem:[%s690 + $0x70] sm:$0xff]
        %v706 = vld [vmem:[%s690 + $0x78] sm:$0xff]
        %s707 = scalar_lea.vmem %s368, 128
        %v708 = vld [vmem:[%s707] sm:$0xff]
        %v709 = vld [vmem:[%s707 + $0x8] sm:$0xff]
        %v710 = vld [vmem:[%s707 + $0x10] sm:$0xff]
        %v711 = vld [vmem:[%s707 + $0x18] sm:$0xff]
        %v712 = vld [vmem:[%s707 + $0x20] sm:$0xff]
        %v713 = vld [vmem:[%s707 + $0x28] sm:$0xff]
        %v714 = vld [vmem:[%s707 + $0x30] sm:$0xff]
        %v715 = vld [vmem:[%s707 + $0x38] sm:$0xff]
        %v716 = vld [vmem:[%s707 + $0x40] sm:$0xff]
        %v717 = vld [vmem:[%s707 + $0x48] sm:$0xff]
        %v718 = vld [vmem:[%s707 + $0x50] sm:$0xff]
        %v719 = vld [vmem:[%s707 + $0x58] sm:$0xff]
        %v720 = vld [vmem:[%s707 + $0x60] sm:$0xff]
        %v721 = vld [vmem:[%s707 + $0x68] sm:$0xff]
        %v722 = vld [vmem:[%s707 + $0x70] sm:$0xff]
        %v723 = vld [vmem:[%s707 + $0x78] sm:$0xff]
        %v724 = vmul.f32 %v689, 0.17677669
        %v726 = vsel %vm539, %v724, 0
        %v729 = vsel %vm539, %v691, 0
        %v732 = vsel %vm539, %v692, 0
        %v735 = vsel %vm539, %v693, 0
        %v738 = vsel %vm539, %v694, 0
        %v741 = vsel %vm539, %v695, 0
        %v744 = vsel %vm539, %v696, 0
        %v747 = vsel %vm539, %v697, 0
        %v750 = vsel %vm539, %v698, 0
        %v753 = vsel %vm539, %v699, 0
        %v756 = vsel %vm539, %v700, 0
        %v759 = vsel %vm539, %v701, 0
        %v762 = vsel %vm539, %v702, 0
        %v765 = vsel %vm539, %v703, 0
        %v768 = vsel %vm539, %v704, 0
        %v771 = vsel %vm539, %v705, 0
        %v774 = vsel %vm539, %v706, 0
        %776 = vmatpush.xpose.msra.mxu0 %v774
        %777 = vmatpush.xpose.msra.mxu0 %v771
        %778 = vmatpush.xpose.msra.mxu0 %v768
        %779 = vmatpush.xpose.msra.mxu0 %v765
        %780 = vmatpush.xpose.msra.mxu0 %v762
        %781 = vmatpush.xpose.msra.mxu0 %v759
        %782 = vmatpush.xpose.msra.mxu0 %v756
        %783 = vmatpush.xpose.msra.mxu0 %v753
        %784 = vmatpush.xpose.msra.mxu0 %v750
        %785 = vmatpush.xpose.msra.mxu0 %v747
        %786 = vmatpush.xpose.msra.mxu0 %v744
        %787 = vmatpush.xpose.msra.mxu0 %v741
        %788 = vmatpush.xpose.msra.mxu0 %v738
        %789 = vmatpush.xpose.msra.mxu0 %v735
        %790 = vmatpush.xpose.msra.mxu0 %v732
        %791 = vmatpush.xpose.msra.mxu0 %v729
        %792 = vmatmul.f32.gmra.mxu0 %v726
        %v793 = vpop.f32.mrf.mxu0
        %v794 = vadd.f32 0.0, %v793
        %795 = vdwg.mxu0
        %v796 = vsel %vm391, -inf, %v794
        %797 = vmax.xlane.f32.xlu0 %v796
        %v798 = vpop.xlane.xlu0 %797
        %v799 = vsub.f32 %v796, %v798
        %v800 = vmul.f32 %v799, 1.442695
        %v801 = vpow.pop %v800
        %802 = vadd.xlane.f32.xlu0 %v801
        %v803 = vpop.xlane.xlu0 %802
        %v804 = vrcp.pop %v803
        %v805 = vmul.f32 %v803, %v804
        %v806 = vsub.f32 1.0, %v805
        %v807 = vmul.f32 %v804, %v806
        %v808 = vadd.f32 %v804, %v807
        %vm809 = vweird.f32 %v803
        %vm810 = vweird.f32 %v804
        %vm811 = vmor %vm809, %vm810
        %v812 = vsel %vm811, %v804, %v808
        %v813 = vand.u32 2147483647, %v803
        %vm814 = vcmp.eq.f32.partialorder %v813, 8.507059e+37
        %v815 = vand.u32 %v803, 2147483648
        %v816 = vor.u32 1.1754944e-38, %v815
        %v817 = vsel %vm814, %v816, %v812
        %v818 = vmul.f32 %v801, %v817
        %819 = vmatpush.msra.mxu0 %v723
        %820 = vmatpush.msra.mxu0 %v722
        %821 = vmatpush.msra.mxu0 %v721
        %822 = vmatpush.msra.mxu0 %v720
        %823 = vmatpush.msra.mxu0 %v719
        %824 = vmatpush.msra.mxu0 %v718
        %825 = vmatpush.msra.mxu0 %v717
        %826 = vmatpush.msra.mxu0 %v716
        %827 = vmatpush.msra.mxu0 %v715
        %828 = vmatpush.msra.mxu0 %v714
        %829 = vmatpush.msra.mxu0 %v713
        %830 = vmatpush.msra.mxu0 %v712
        %831 = vmatpush.msra.mxu0 %v711
        %832 = vmatpush.msra.mxu0 %v710
        %833 = vmatpush.msra.mxu0 %v709
        %834 = vmatpush.msra.mxu0 %v708
        %835 = vmatmul.f32.gmra.mxu0 %v818
        %v836 = vpop.f32.mrf.mxu0
        %v837 = vadd.f32 0.0, %v836
        %838 = vdwg.mxu0
        %s839 = scalar_lea.vmem %s328, 8 [#allocation2]
        %840 = vst.msk [vmem:[%s839] sm:$0xff] %vm539, %v837
        %s841 = scalar_lea.vmem %s335, 8 [#allocation4]
        %842 = vst [vmem:[%s841] sm:$0xff] %v818
        %s843 = scalar_lea.vmem %s383, 8
        %v844 = vld [vmem:[%s843] sm:$0xff]
        %v845 = vrcp.pop %v844
        %v846 = vmul.f32 %v844, %v845
        %v847 = vsub.f32 1.0, %v846
        %v848 = vmul.f32 %v845, %v847
        %v849 = vadd.f32 %v845, %v848
        %vm850 = vweird.f32 %v844
        %vm851 = vweird.f32 %v845
        %vm852 = vmor %vm850, %vm851
        %v853 = vsel %vm852, %v845, %v849
        %v854 = vand.u32 2147483647, %v844
        %vm855 = vcmp.eq.f32.partialorder %v854, 8.507059e+37
        %v856 = vand.u32 %v844, 2147483648
        %v857 = vor.u32 1.1754944e-38, %v856
        %v858 = vsel %vm855, %v857, %v853
        %v859 = vmul.f32 %v858, 0.3989423
        %v860 = vmul.f32 %v858, %v858
        %862 = vset.pattern.permute.xlu0 0
        %863 = vperm.xlu0 %862, %v860
        %v864 = vpop.permute.xlu0 %863
        %v866 = vmul.f32 %v395, %v864
        %v867 = vmul.f32 %v866, 1.442695
        %v868 = vpow.pop %v867
        %870 = vset.pattern.permute.xlu0 0
        %871 = vperm.xlu0 %870, %v859
        %v872 = vpop.permute.xlu0 %871
        %v874 = vmul.f32 %v872, %v868
        %s875 = scalar_lea.vmem %s342, 8 [#allocation6]
        %876 = vst [vmem:[%s875] sm:$0xff] %v874
        %s877 = scalar_lea.vmem %s354, 16
        %v878 = vld [vmem:[%s877] sm:$0xff]
        %s879 = scalar_lea.vmem %s361, 256
        %v880 = vld [vmem:[%s879] sm:$0xff]
        %v881 = vld [vmem:[%s879 + $0x8] sm:$0xff]
        %v882 = vld [vmem:[%s879 + $0x10] sm:$0xff]
        %v883 = vld [vmem:[%s879 + $0x18] sm:$0xff]
        %v884 = vld [vmem:[%s879 + $0x20] sm:$0xff]
        %v885 = vld [vmem:[%s879 + $0x28] sm:$0xff]
        %v886 = vld [vmem:[%s879 + $0x30] sm:$0xff]
        %v887 = vld [vmem:[%s879 + $0x38] sm:$0xff]
        %v888 = vld [vmem:[%s879 + $0x40] sm:$0xff]
        %v889 = vld [vmem:[%s879 + $0x48] sm:$0xff]
        %v890 = vld [vmem:[%s879 + $0x50] sm:$0xff]
        %v891 = vld [vmem:[%s879 + $0x58] sm:$0xff]
        %v892 = vld [vmem:[%s879 + $0x60] sm:$0xff]
        %v893 = vld [vmem:[%s879 + $0x68] sm:$0xff]
        %v894 = vld [vmem:[%s879 + $0x70] sm:$0xff]
        %v895 = vld [vmem:[%s879 + $0x78] sm:$0xff]
        %s896 = scalar_lea.vmem %s368, 256
        %v897 = vld [vmem:[%s896] sm:$0xff]
        %v898 = vld [vmem:[%s896 + $0x8] sm:$0xff]
        %v899 = vld [vmem:[%s896 + $0x10] sm:$0xff]
        %v900 = vld [vmem:[%s896 + $0x18] sm:$0xff]
        %v901 = vld [vmem:[%s896 + $0x20] sm:$0xff]
        %v902 = vld [vmem:[%s896 + $0x28] sm:$0xff]
        %v903 = vld [vmem:[%s896 + $0x30] sm:$0xff]
        %v904 = vld [vmem:[%s896 + $0x38] sm:$0xff]
        %v905 = vld [vmem:[%s896 + $0x40] sm:$0xff]
        %v906 = vld [vmem:[%s896 + $0x48] sm:$0xff]
        %v907 = vld [vmem:[%s896 + $0x50] sm:$0xff]
        %v908 = vld [vmem:[%s896 + $0x58] sm:$0xff]
        %v909 = vld [vmem:[%s896 + $0x60] sm:$0xff]
        %v910 = vld [vmem:[%s896 + $0x68] sm:$0xff]
        %v911 = vld [vmem:[%s896 + $0x70] sm:$0xff]
        %v912 = vld [vmem:[%s896 + $0x78] sm:$0xff]
        %v913 = vmul.f32 %v878, 0.17677669
        %v915 = vsel %vm539, %v913, 0
        %v918 = vsel %vm539, %v880, 0
        %v921 = vsel %vm539, %v881, 0
        %v924 = vsel %vm539, %v882, 0
        %v927 = vsel %vm539, %v883, 0
        %v930 = vsel %vm539, %v884, 0
        %v933 = vsel %vm539, %v885, 0
        %v936 = vsel %vm539, %v886, 0
        %v939 = vsel %vm539, %v887, 0
        %v942 = vsel %vm539, %v888, 0
        %v945 = vsel %vm539, %v889, 0
        %v948 = vsel %vm539, %v890, 0
        %v951 = vsel %vm539, %v891, 0
        %v954 = vsel %vm539, %v892, 0
        %v957 = vsel %vm539, %v893, 0
        %v960 = vsel %vm539, %v894, 0
        %v963 = vsel %vm539, %v895, 0
        %965 = vmatpush.xpose.msra.mxu0 %v963
        %966 = vmatpush.xpose.msra.mxu0 %v960
        %967 = vmatpush.xpose.msra.mxu0 %v957
        %968 = vmatpush.xpose.msra.mxu0 %v954
        %969 = vmatpush.xpose.msra.mxu0 %v951
        %970 = vmatpush.xpose.msra.mxu0 %v948
        %971 = vmatpush.xpose.msra.mxu0 %v945
        %972 = vmatpush.xpose.msra.mxu0 %v942
        %973 = vmatpush.xpose.msra.mxu0 %v939
        %974 = vmatpush.xpose.msra.mxu0 %v936
        %975 = vmatpush.xpose.msra.mxu0 %v933
        %976 = vmatpush.xpose.msra.mxu0 %v930
        %977 = vmatpush.xpose.msra.mxu0 %v927
        %978 = vmatpush.xpose.msra.mxu0 %v924
        %979 = vmatpush.xpose.msra.mxu0 %v921
        %980 = vmatpush.xpose.msra.mxu0 %v918
        %981 = vmatmul.f32.gmra.mxu0 %v915
        %v982 = vpop.f32.mrf.mxu0
        %v983 = vadd.f32 0.0, %v982
        %984 = vdwg.mxu0
        %v985 = vsel %vm391, -inf, %v983
        %986 = vmax.xlane.f32.xlu0 %v985
        %v987 = vpop.xlane.xlu0 %986
        %v988 = vsub.f32 %v985, %v987
        %v989 = vmul.f32 %v988, 1.442695
        %v990 = vpow.pop %v989
        %991 = vadd.xlane.f32.xlu0 %v990
        %v992 = vpop.xlane.xlu0 %991
        %v993 = vrcp.pop %v992
        %v994 = vmul.f32 %v992, %v993
        %v995 = vsub.f32 1.0, %v994
        %v996 = vmul.f32 %v993, %v995
        %v997 = vadd.f32 %v993, %v996
        %vm998 = vweird.f32 %v992
        %vm999 = vweird.f32 %v993
        %vm1000 = vmor %vm998, %vm999
        %v1001 = vsel %vm1000, %v993, %v997
        %v1002 = vand.u32 2147483647, %v992
        %vm1003 = vcmp.eq.f32.partialorder %v1002, 8.507059e+37
        %v1004 = vand.u32 %v992, 2147483648
        %v1005 = vor.u32 1.1754944e-38, %v1004
        %v1006 = vsel %vm1003, %v1005, %v1001
        %v1007 = vmul.f32 %v990, %v1006
        %1008 = vmatpush.msra.mxu0 %v912
        %1009 = vmatpush.msra.mxu0 %v911
        %1010 = vmatpush.msra.mxu0 %v910
        %1011 = vmatpush.msra.mxu0 %v909
        %1012 = vmatpush.msra.mxu0 %v908
        %1013 = vmatpush.msra.mxu0 %v907
        %1014 = vmatpush.msra.mxu0 %v906
        %1015 = vmatpush.msra.mxu0 %v905
        %1016 = vmatpush.msra.mxu0 %v904
        %1017 = vmatpush.msra.mxu0 %v903
        %1018 = vmatpush.msra.mxu0 %v902
        %1019 = vmatpush.msra.mxu0 %v901
        %1020 = vmatpush.msra.mxu0 %v900
        %1021 = vmatpush.msra.mxu0 %v899
        %1022 = vmatpush.msra.mxu0 %v898
        %1023 = vmatpush.msra.mxu0 %v897
        %1024 = vmatmul.f32.gmra.mxu0 %v1007
        %v1025 = vpop.f32.mrf.mxu0
        %v1026 = vadd.f32 0.0, %v1025
        %1027 = vdwg.mxu0
        %s1028 = scalar_lea.vmem %s328, 16 [#allocation2]
        %1029 = vst.msk [vmem:[%s1028] sm:$0xff] %vm539, %v1026
        %s1030 = scalar_lea.vmem %s335, 16 [#allocation4]
        %1031 = vst [vmem:[%s1030] sm:$0xff] %v1007
        %s1032 = scalar_lea.vmem %s383, 16
        %v1033 = vld [vmem:[%s1032] sm:$0xff]
        %v1034 = vrcp.pop %v1033
        %v1035 = vmul.f32 %v1033, %v1034
        %v1036 = vsub.f32 1.0, %v1035
        %v1037 = vmul.f32 %v1034, %v1036
        %v1038 = vadd.f32 %v1034, %v1037
        %vm1039 = vweird.f32 %v1033
        %vm1040 = vweird.f32 %v1034
        %vm1041 = vmor %vm1039, %vm1040
        %v1042 = vsel %vm1041, %v1034, %v1038
        %v1043 = vand.u32 2147483647, %v1033
        %vm1044 = vcmp.eq.f32.partialorder %v1043, 8.507059e+37
        %v1045 = vand.u32 %v1033, 2147483648
        %v1046 = vor.u32 1.1754944e-38, %v1045
        %v1047 = vsel %vm1044, %v1046, %v1042
        %v1048 = vmul.f32 %v1047, 0.3989423
        %v1049 = vmul.f32 %v1047, %v1047
        %1051 = vset.pattern.permute.xlu0 0
        %1052 = vperm.xlu0 %1051, %v1049
        %v1053 = vpop.permute.xlu0 %1052
        %v1055 = vmul.f32 %v395, %v1053
        %v1056 = vmul.f32 %v1055, 1.442695
        %v1057 = vpow.pop %v1056
        %1059 = vset.pattern.permute.xlu0 0
        %1060 = vperm.xlu0 %1059, %v1048
        %v1061 = vpop.permute.xlu0 %1060
        %v1063 = vmul.f32 %v1061, %v1057
        %s1064 = scalar_lea.vmem %s342, 16 [#allocation6]
        %1065 = vst [vmem:[%s1064] sm:$0xff] %v1063
        %s1066 = scalar_lea.vmem %s354, 24
        %v1067 = vld [vmem:[%s1066] sm:$0xff]
        %s1068 = scalar_lea.vmem %s361, 384
        %v1069 = vld [vmem:[%s1068] sm:$0xff]
        %v1070 = vld [vmem:[%s1068 + $0x8] sm:$0xff]
        %v1071 = vld [vmem:[%s1068 + $0x10] sm:$0xff]
        %v1072 = vld [vmem:[%s1068 + $0x18] sm:$0xff]
        %v1073 = vld [vmem:[%s1068 + $0x20] sm:$0xff]
        %v1074 = vld [vmem:[%s1068 + $0x28] sm:$0xff]
        %v1075 = vld [vmem:[%s1068 + $0x30] sm:$0xff]
        %v1076 = vld [vmem:[%s1068 + $0x38] sm:$0xff]
        %v1077 = vld [vmem:[%s1068 + $0x40] sm:$0xff]
        %v1078 = vld [vmem:[%s1068 + $0x48] sm:$0xff]
        %v1079 = vld [vmem:[%s1068 + $0x50] sm:$0xff]
        %v1080 = vld [vmem:[%s1068 + $0x58] sm:$0xff]
        %v1081 = vld [vmem:[%s1068 + $0x60] sm:$0xff]
        %v1082 = vld [vmem:[%s1068 + $0x68] sm:$0xff]
        %v1083 = vld [vmem:[%s1068 + $0x70] sm:$0xff]
        %v1084 = vld [vmem:[%s1068 + $0x78] sm:$0xff]
        %s1085 = scalar_lea.vmem %s368, 384
        %v1086 = vld [vmem:[%s1085] sm:$0xff]
        %v1087 = vld [vmem:[%s1085 + $0x8] sm:$0xff]
        %v1088 = vld [vmem:[%s1085 + $0x10] sm:$0xff]
        %v1089 = vld [vmem:[%s1085 + $0x18] sm:$0xff]
        %v1090 = vld [vmem:[%s1085 + $0x20] sm:$0xff]
        %v1091 = vld [vmem:[%s1085 + $0x28] sm:$0xff]
        %v1092 = vld [vmem:[%s1085 + $0x30] sm:$0xff]
        %v1093 = vld [vmem:[%s1085 + $0x38] sm:$0xff]
        %v1094 = vld [vmem:[%s1085 + $0x40] sm:$0xff]
        %v1095 = vld [vmem:[%s1085 + $0x48] sm:$0xff]
        %v1096 = vld [vmem:[%s1085 + $0x50] sm:$0xff]
        %v1097 = vld [vmem:[%s1085 + $0x58] sm:$0xff]
        %v1098 = vld [vmem:[%s1085 + $0x60] sm:$0xff]
        %v1099 = vld [vmem:[%s1085 + $0x68] sm:$0xff]
        %v1100 = vld [vmem:[%s1085 + $0x70] sm:$0xff]
        %v1101 = vld [vmem:[%s1085 + $0x78] sm:$0xff]
        %v1102 = vmul.f32 %v1067, 0.17677669
        %v1104 = vsel %vm539, %v1102, 0
        %v1107 = vsel %vm539, %v1069, 0
        %v1110 = vsel %vm539, %v1070, 0
        %v1113 = vsel %vm539, %v1071, 0
        %v1116 = vsel %vm539, %v1072, 0
        %v1119 = vsel %vm539, %v1073, 0
        %v1122 = vsel %vm539, %v1074, 0
        %v1125 = vsel %vm539, %v1075, 0
        %v1128 = vsel %vm539, %v1076, 0
        %v1131 = vsel %vm539, %v1077, 0
        %v1134 = vsel %vm539, %v1078, 0
        %v1137 = vsel %vm539, %v1079, 0
        %v1140 = vsel %vm539, %v1080, 0
        %v1143 = vsel %vm539, %v1081, 0
        %v1146 = vsel %vm539, %v1082, 0
        %v1149 = vsel %vm539, %v1083, 0
        %v1152 = vsel %vm539, %v1084, 0
        %1154 = vmatpush.xpose.msra.mxu0 %v1152
        %1155 = vmatpush.xpose.msra.mxu0 %v1149
        %1156 = vmatpush.xpose.msra.mxu0 %v1146
        %1157 = vmatpush.xpose.msra.mxu0 %v1143
        %1158 = vmatpush.xpose.msra.mxu0 %v1140
        %1159 = vmatpush.xpose.msra.mxu0 %v1137
        %1160 = vmatpush.xpose.msra.mxu0 %v1134
        %1161 = vmatpush.xpose.msra.mxu0 %v1131
        %1162 = vmatpush.xpose.msra.mxu0 %v1128
        %1163 = vmatpush.xpose.msra.mxu0 %v1125
        %1164 = vmatpush.xpose.msra.mxu0 %v1122
        %1165 = vmatpush.xpose.msra.mxu0 %v1119
        %1166 = vmatpush.xpose.msra.mxu0 %v1116
        %1167 = vmatpush.xpose.msra.mxu0 %v1113
        %1168 = vmatpush.xpose.msra.mxu0 %v1110
        %1169 = vmatpush.xpose.msra.mxu0 %v1107
        %1170 = vmatmul.f32.gmra.mxu0 %v1104
        %v1171 = vpop.f32.mrf.mxu0
        %v1172 = vadd.f32 0.0, %v1171
        %1173 = vdwg.mxu0
        %v1174 = vsel %vm391, -inf, %v1172
        %1175 = vmax.xlane.f32.xlu0 %v1174
        %v1176 = vpop.xlane.xlu0 %1175
        %v1177 = vsub.f32 %v1174, %v1176
        %v1178 = vmul.f32 %v1177, 1.442695
        %v1179 = vpow.pop %v1178
        %1180 = vadd.xlane.f32.xlu0 %v1179
        %v1181 = vpop.xlane.xlu0 %1180
        %v1182 = vrcp.pop %v1181
        %v1183 = vmul.f32 %v1181, %v1182
        %v1184 = vsub.f32 1.0, %v1183
        %v1185 = vmul.f32 %v1182, %v1184
        %v1186 = vadd.f32 %v1182, %v1185
        %vm1187 = vweird.f32 %v1181
        %vm1188 = vweird.f32 %v1182
        %vm1189 = vmor %vm1187, %vm1188
        %v1190 = vsel %vm1189, %v1182, %v1186
        %v1191 = vand.u32 2147483647, %v1181
        %vm1192 = vcmp.eq.f32.partialorder %v1191, 8.507059e+37
        %v1193 = vand.u32 %v1181, 2147483648
        %v1194 = vor.u32 1.1754944e-38, %v1193
        %v1195 = vsel %vm1192, %v1194, %v1190
        %v1196 = vmul.f32 %v1179, %v1195
        %1197 = vmatpush.msra.mxu0 %v1101
        %1198 = vmatpush.msra.mxu0 %v1100
        %1199 = vmatpush.msra.mxu0 %v1099
        %1200 = vmatpush.msra.mxu0 %v1098
        %1201 = vmatpush.msra.mxu0 %v1097
        %1202 = vmatpush.msra.mxu0 %v1096
        %1203 = vmatpush.msra.mxu0 %v1095
        %1204 = vmatpush.msra.mxu0 %v1094
        %1205 = vmatpush.msra.mxu0 %v1093
        %1206 = vmatpush.msra.mxu0 %v1092
        %1207 = vmatpush.msra.mxu0 %v1091
        %1208 = vmatpush.msra.mxu0 %v1090
        %1209 = vmatpush.msra.mxu0 %v1089
        %1210 = vmatpush.msra.mxu0 %v1088
        %1211 = vmatpush.msra.mxu0 %v1087
        %1212 = vmatpush.msra.mxu0 %v1086
        %1213 = vmatmul.f32.gmra.mxu0 %v1196
        %v1214 = vpop.f32.mrf.mxu0
        %v1215 = vadd.f32 0.0, %v1214
        %1216 = vdwg.mxu0
        %s1217 = scalar_lea.vmem %s328, 24 [#allocation2]
        %1218 = vst.msk [vmem:[%s1217] sm:$0xff] %vm539, %v1215
        %s1219 = scalar_lea.vmem %s335, 24 [#allocation4]
        %1220 = vst [vmem:[%s1219] sm:$0xff] %v1196
        %s1221 = scalar_lea.vmem %s383, 24
        %v1222 = vld [vmem:[%s1221] sm:$0xff]
        %v1223 = vrcp.pop %v1222
        %v1224 = vmul.f32 %v1222, %v1223
        %v1225 = vsub.f32 1.0, %v1224
        %v1226 = vmul.f32 %v1223, %v1225
        %v1227 = vadd.f32 %v1223, %v1226
        %vm1228 = vweird.f32 %v1222
        %vm1229 = vweird.f32 %v1223
        %vm1230 = vmor %vm1228, %vm1229
        %v1231 = vsel %vm1230, %v1223, %v1227
        %v1232 = vand.u32 2147483647, %v1222
        %vm1233 = vcmp.eq.f32.partialorder %v1232, 8.507059e+37
        %v1234 = vand.u32 %v1222, 2147483648
        %v1235 = vor.u32 1.1754944e-38, %v1234
        %v1236 = vsel %vm1233, %v1235, %v1231
        %v1237 = vmul.f32 %v1236, 0.3989423
        %v1238 = vmul.f32 %v1236, %v1236
        %1240 = vset.pattern.permute.xlu0 0
        %1241 = vperm.xlu0 %1240, %v1238
        %v1242 = vpop.permute.xlu0 %1241
        %v1244 = vmul.f32 %v395, %v1242
        %v1245 = vmul.f32 %v1244, 1.442695
        %v1246 = vpow.pop %v1245
        %1248 = vset.pattern.permute.xlu0 0
        %1249 = vperm.xlu0 %1248, %v1237
        %v1250 = vpop.permute.xlu0 %1249
        %v1252 = vmul.f32 %v1250, %v1246
        %s1253 = scalar_lea.vmem %s342, 24 [#allocation6]
        %1254 = vst [vmem:[%s1253] sm:$0xff] %v1252
        %s1255 = sand.u32 %s137, 1
        %s1256 = scalar_lea.sflag [#allocation3], %s1255
        %s1257 = sand.u32 %s137, 1
        %s1258 = smul.addr %s1257, 32
        %s1259 = scalar_lea.vmem [#allocation2], %s1258
        %s1260 = sand.u32 %s25, 1
        %s1261 = scalar_lea.sflag [#allocation5], %s1260
        %s1262 = sand.u32 %s163, 1
        %s1263 = smul.addr %s1262, 32
        %s1264 = scalar_lea.vmem [#allocation4], %s1263
        %s1265 = sand.u32 %s25, 1
        %s1266 = scalar_lea.sflag [#allocation5], %s1265
        %s1267 = sand.u32 %s189, 1
        %s1268 = smul.addr %s1267, 32
        %s1269 = scalar_lea.vmem [#allocation6], %s1268
        %s1270 = smul.u32 4, %s25
        %p1271 = scmp.lt.s32.totalorder %s1270, 7
        %s1272 = scalar_select %p1271, %s1270, 7
        %s1273 = smul.addr %s1272, 8
        %s1274 = scalar_lea.vmem %s7, %s1273
        // Predicated region
        $region37: #{tpu_custom_call.1} parent=35 // pred_check
          %p1275 = pneg %p147
        $region38: #{tpu_custom_call.1} parent=35 // pred_check_branch
          %1277 = sbr.rel (%p1275) target = $region40
        $region39: #{tpu_custom_call.1} parent=35 // pred_region
          %s1278 = smul.u32 4, %s25
          %1280 = vsyncadd %s1256, 0
          %s1281 = smul.addr %s1278, 8
          %s1282 = scalar_lea.hbm %s4, %s1281
          %s1283 = sshll.u32 %s1259, 4
          %s1284 = int_to_ptr.vmem [resolvable:$true] %s1283
          %s1285 = sshll.u32 %s1282, 4
          %s1286 = int_to_ptr.hbm [resolvable:$true] %s1285
          %1291 = dma.vmem_to_hbm [thread:$0]  %s1284, 512, %s1286, %s1256, 128, 128, 8
        $region40: #{tpu_custom_call.1} parent=35 // pred_fallthru
          _
        // Predicated region
        $region41: #{tpu_custom_call.1} parent=35 // pred_check
          %p1292 = pneg %p173
        $region42: #{tpu_custom_call.1} parent=35 // pred_check_branch
          %1294 = sbr.rel (%p1292) target = $region44
        $region43: #{tpu_custom_call.1} parent=35 // pred_region
          %s1295 = smul.u32 4, %s25
          %1297 = vsyncadd %s1261, 0
          %s1298 = smul.addr %s1295, 8
          %s1299 = scalar_lea.hbm %s5, %s1298
          %s1300 = sshll.u32 %s1264, 4
          %s1301 = int_to_ptr.vmem [resolvable:$true] %s1300
          %s1302 = sshll.u32 %s1299, 4
          %s1303 = int_to_ptr.hbm [resolvable:$true] %s1302
          %1308 = dma.vmem_to_hbm [thread:$0]  %s1301, 512, %s1303, %s1261, 128, 128, 8
        $region44: #{tpu_custom_call.1} parent=35 // pred_fallthru
          _
        // Predicated region
        $region45: #{tpu_custom_call.1} parent=35 // pred_check
          %p1309 = pneg %p199
        $region46: #{tpu_custom_call.1} parent=35 // pred_check_branch
          %1311 = sbr.rel (%p1309) target = $region48
        $region47: #{tpu_custom_call.1} parent=35 // pred_region
          %s1312 = smul.u32 4, %s25
          %1314 = vsyncadd %s1266, 0
          %s1315 = smul.addr %s1312, 8
          %s1316 = scalar_lea.hbm %s6, %s1315
          %s1317 = sshll.u32 %s1269, 4
          %s1318 = int_to_ptr.vmem [resolvable:$true] %s1317
          %s1319 = sshll.u32 %s1316, 4
          %s1320 = int_to_ptr.hbm [resolvable:$true] %s1319
          %1325 = dma.vmem_to_hbm [thread:$0]  %s1318, 512, %s1320, %s1266, 128, 128, 8
        $region48: #{tpu_custom_call.1} parent=35 // pred_fallthru
          _
        // Predicated region
        $region49: #{tpu_custom_call.1} parent=35 // pred_check
          %p1326 = pneg %p225
        $region50: #{tpu_custom_call.1} parent=35 // pred_check_branch
          %1328 = sbr.rel (%p1326) target = $region52
        $region51: #{tpu_custom_call.1} parent=35 // pred_region
          %s1329 = smul.u32 4, %s25
        $region52: #{tpu_custom_call.1} parent=35 // pred_fallthru
          _
      $region36: #{tpu_custom_call.1} parent=5 // pred_fallthru
        _
      %p1330 = scmp.le.s32.totalorder 2, %s20
      // Predicated region
      $region53: #{tpu_custom_call.1} parent=5 // pred_check
        %p1331 = pneg %p1330
      $region54: #{tpu_custom_call.1} parent=5 // pred_check_branch
        %1333 = sbr.rel (%p1331) target = $region56
      $region55: #{tpu_custom_call.1} parent=5 // pred_region
        %s1334 = ssub.s32 %s20, 2
        // Predicated region
        $region57: #{tpu_custom_call.1} parent=55 // pred_check
          %p1335 = pneg %p153
        $region58: #{tpu_custom_call.1} parent=55 // pred_check_branch
          %1337 = sbr.rel (%p1335) target = $region60
        $region59: #{tpu_custom_call.1} parent=55 // pred_region
          %s1338 = sand.u32 %s138, 1
          %s1339 = scalar_lea.sflag [#allocation3], %s1338
          %s1340 = sand.u32 %s138, 1
          %s1341 = smul.addr %s1340, 32
          %s1342 = scalar_lea.vmem [#allocation2], %s1341
          %1344 = dma.done %s1339, 512
        $region60: #{tpu_custom_call.1} parent=55 // pred_fallthru
          _
        // Predicated region
        $region61: #{tpu_custom_call.1} parent=55 // pred_check
          %p1345 = pneg %p179
        $region62: #{tpu_custom_call.1} parent=55 // pred_check_branch
          %1347 = sbr.rel (%p1345) target = $region64
        $region63: #{tpu_custom_call.1} parent=55 // pred_region
          %s1348 = sand.u32 %s26, 1
          %s1349 = scalar_lea.sflag [#allocation5], %s1348
          %s1350 = sand.u32 %s164, 1
          %s1351 = smul.addr %s1350, 32
          %s1352 = scalar_lea.vmem [#allocation4], %s1351
          %1354 = dma.done %s1349, 512
        $region64: #{tpu_custom_call.1} parent=55 // pred_fallthru
          _
        // Predicated region
        $region65: #{tpu_custom_call.1} parent=55 // pred_check
          %p1355 = pneg %p205
        $region66: #{tpu_custom_call.1} parent=55 // pred_check_branch
          %1357 = sbr.rel (%p1355) target = $region68
        $region67: #{tpu_custom_call.1} parent=55 // pred_region
          %s1358 = sand.u32 %s26, 1
          %s1359 = scalar_lea.sflag [#allocation5], %s1358
          %s1360 = sand.u32 %s190, 1
          %s1361 = smul.addr %s1360, 32
          %s1362 = scalar_lea.vmem [#allocation6], %s1361
          %1364 = dma.done %s1359, 512
        $region68: #{tpu_custom_call.1} parent=55 // pred_fallthru
          _
        // Predicated region
        $region69: #{tpu_custom_call.1} parent=55 // pred_check
          %p1365 = pneg %p231
        $region70: #{tpu_custom_call.1} parent=55 // pred_check_branch
          %1367 = sbr.rel (%p1365) target = $region72
        $region71: #{tpu_custom_call.1} parent=55 // pred_region
          %s1368 = smul.u32 4, %s26
          %p1369 = scmp.lt.s32.totalorder %s1368, 7
          %s1370 = scalar_select %p1369, %s1368, 7
          %s1371 = smul.addr %s1370, 8
          %s1372 = scalar_lea.vmem %s7, %s1371
        $region72: #{tpu_custom_call.1} parent=55 // pred_fallthru
          _
      $region56: #{tpu_custom_call.1} parent=5 // pred_fallthru
        _
    $region6: #{tpu_custom_call.1} parent=1 // loop_footer
      %s24 = sadd.s32 1, %s20
    $region7: #{tpu_custom_call.1} parent=1 // loop_footer_branch
      %19 = sbr.rel target = $region3
    $region8: #{tpu_custom_call.1} parent=1 // loop_exit
      _
    %1373 = vsyncpa [#allocation3], 1
    %s1374 = scalar_lea.sflag [#allocation3], 1
    %1375 = vsyncpa %s1374, 1
    %1376 = vsyncpa [#allocation5], 1
    %s1377 = scalar_lea.sflag [#allocation5], 1
    %1378 = vsyncpa %s1377, 1

</llo_original>
